<compile_context>
chip_gen: v7x
topology: tpu7x:2x2x1
jax: 0.10.0
libtpu: 0.0.40
codegen_flags: <defaults>
</compile_context>

<pallas_src>
import functools

import jax
import jax.numpy as jnp
import numpy as np
from jax.experimental import pallas as pl
from jax.experimental.pallas import tpu as pltpu


def _round_up(v, m):
    return (v + m - 1) // m * m


def _col_masks(W, HW, pad):
    """Per-lane validity masks for taps with dw != 0 (column wraparound)."""
    lane = jax.lax.broadcasted_iota(jnp.int32, (1, HW), 1)
    w_idx = lane % W
    return {dw: (w_idx + dw >= 0) & (w_idx + dw < W)
            for dw in range(-pad, pad + 1) if dw != 0}


def _conv_kxk_flat(src_ref, off, wmat, col_ok, *, H, W, K, pad):
    """K x K 'same' conv on a channel-major, spatially-flattened image.

    src_ref : Ref[(C, Lp)]; the H*W image occupies lanes [off, off + H*W).
              Lanes [off - halo, off) and [off + H*W, off + H*W + halo) are
              guaranteed ZERO (halo = pad*(W+1)), so taps that fall off the
              top/bottom of the image read zeros and need no row mask.
    wmat    : (Co, K*K*C) f32 value, rows ordered as (kh, kw, c).
    col_ok  : dict dw -> (1, H*W) bool mask (only dw != 0 entries needed).
    returns : (Co, H*W) f32 convolution output (no bias).
    """
    HW = H * W
    pieces = []
    for kh in range(K):
        dh = kh - pad
        for kw in range(K):
            dw = kw - pad
            start = off + dh * W + dw                     # static Python int
            piece = src_ref[:, start:start + HW]          # (C, HW)
            if dw != 0:
                piece = jnp.where(col_ok[dw], piece, 0.0)
            pieces.append(piece)
    patches = jnp.concatenate(pieces, axis=0)             # (K*K*C, HW)
    return jnp.dot(wmat, patches, preferred_element_type=jnp.float32)


def _stage_halo(pad_ref, interior, off, HW):
    """Zero the two aligned halo strips and store the interior (lane off)."""
    C, Lp = pad_ref.shape
    pad_ref[:, 0:off] = jnp.zeros((C, off), pad_ref.dtype)
    pad_ref[:, off + HW:Lp] = jnp.zeros((C, Lp - off - HW), pad_ref.dtype)
    pad_ref[:, off:off + HW] = interior


def _conv0_stats_kernel(x_ref, w0_ref, b0_ref, ssum_ref, ssq_ref, xpad_ref, *,
                        H, W, K, pad, off):
    """Pass 1: conv0 (+bias) and per-image BN partial statistics only."""
    HW = H * W
    col_ok = _col_masks(W, HW, pad)
    _stage_halo(xpad_ref, x_ref[0], off, HW)
    c0 = _conv_kxk_flat(xpad_ref, off, w0_ref[...], col_ok,
                        H=H, W=W, K=K, pad=pad) + b0_ref[...]   # (Cmid, HW)
    ssum_ref[0] = jnp.sum(c0, axis=1, keepdims=True)            # (Cmid, 1)
    ssq_ref[0] = jnp.sum(c0 * c0, axis=1, keepdims=True)        # (Cmid, 1)


def _fused_resblock_kernel(x_ref, scale_ref, shift_ref, w0_ref, b0_ref,
                           w1_ref, b1_ref, o_ref, xpad_ref, ypad_ref, *,
                           H, W, K, pad, off, res_scale):
    """Pass 2: recompute conv0, BN-apply + ReLU + conv1 (+bias) + residual."""
    HW = H * W
    col_ok = _col_masks(W, HW, pad)

    # conv0 recompute (cheaper than an HBM round trip of c0).
    _stage_halo(xpad_ref, x_ref[0], off, HW)
    c0 = _conv_kxk_flat(xpad_ref, off, w0_ref[...], col_ok,
                        H=H, W=W, K=K, pad=pad) + b0_ref[...]   # (Cmid, HW)

    # BatchNorm (precomputed per-channel scale/shift) + ReLU (VPU).
    y = jnp.maximum(c0 * scale_ref[...] + shift_ref[...], 0.0)

    # conv1 on the activated features, then residual add.
    _stage_halo(ypad_ref, y, off, HW)
    r = _conv_kxk_flat(ypad_ref, off, w1_ref[...], col_ok,
                       H=H, W=W, K=K, pad=pad) + b1_ref[...]    # (Cout, HW)
    o_ref[0] = x_ref[0] + res_scale * r


def resblock_forward(x_nchw, params, *, res_scale=1.0, eps=1e-5):
    """ResBlock forward: x + res_scale * conv1(relu(bn(conv0(x))))."""
    w0, b0 = params["w0"], params["b0"]          # (K,K,Cin,Cmid), (Cmid,)
    gamma, beta = params["gamma"], params["beta"]
    w1, b1 = params["w1"], params["b1"]          # (K,K,Cmid,Cout), (Cout,)

    N, Cin, H, W = x_nchw.shape
    K, Cmid = w0.shape[0], w0.shape[3]
    Cout = w1.shape[3]
    assert Cin == Cout, "residual add requires in_channel == out_channel"
    pad = (K - 1) // 2                 # get_valid_padding(kernel_size, 1)
    HW = H * W
    assert HW % 128 == 0, "lane-dense layout expects H*W % 128 == 0"
    halo = pad * (W + 1)               # max |dh*W + dw| over conv taps
    off = _round_up(max(halo, 1), 128) # 128-aligned interior start
    Lp = off + HW + off                # symmetric aligned halo buffer
    f32 = jnp.float32

    # Channel-major, spatially-flattened activations (lane dim = H*W).
    # Pure metadata reshape -- no host-side padding copy.
    x = x_nchw.astype(f32).reshape(N, Cin, HW)

    # Conv weights as (Cout, K*K*Cin) matching the (kh, kw, c) patch ordering.
    w0r = w0.astype(f32).reshape(K * K * Cin, Cmid).T           # (Cmid, K*K*Cin)
    w1r = w1.astype(f32).reshape(K * K * Cmid, Cout).T          # (Cout, K*K*Cmid)
    b0c = b0.astype(f32).reshape(Cmid, 1)
    b1c = b1.astype(f32).reshape(Cout, 1)

    cparams = pltpu.CompilerParams(
        dimension_semantics=("parallel",),
        vmem_limit_bytes=48 * 1024 * 1024)

    # ---- pass 1: conv0 + per-image BN partial statistics (no c0 output) ----
    kern_a = functools.partial(_conv0_stats_kernel,
                               H=H, W=W, K=K, pad=pad, off=off)
    cost_a = pl.CostEstimate(
        flops=2 * N * HW * (K * K * Cin) * Cmid + 4 * N * HW * Cmid,
        transcendentals=0,
        bytes_accessed=4 * (N * Cin * HW + Cmid * K * K * Cin + Cmid
                            + 2 * N * Cmid))
    ssum_p, ssq_p = pl.pallas_call(
        kern_a,
        grid=(N,),
        in_specs=[
            pl.BlockSpec((1, Cin, HW), lambda n: (n, 0, 0)),
            pl.BlockSpec((Cmid, K * K * Cin), lambda n: (0, 0)),
            pl.BlockSpec((Cmid, 1), lambda n: (0, 0)),
        ],
        out_specs=(
            pl.BlockSpec((1, Cmid, 1), lambda n: (n, 0, 0)),
            pl.BlockSpec((1, Cmid, 1), lambda n: (n, 0, 0)),
        ),
        out_shape=(
            jax.ShapeDtypeStruct((N, Cmid, 1), f32),
            jax.ShapeDtypeStruct((N, Cmid, 1), f32),
        ),
        scratch_shapes=[pltpu.VMEM((Cin, Lp), f32)],
        compiler_params=cparams,
        cost_estimate=cost_a,
    )(x, w0r, b0c)

    # ---- finalize batch statistics (tiny, left to XLA) ---------------------
    cnt = float(N * HW)
    ssum = jnp.sum(ssum_p[:, :, 0], axis=0)               # (Cmid,)
    ssq = jnp.sum(ssq_p[:, :, 0], axis=0)                 # (Cmid,)
    mean = ssum / cnt
    # E[x^2]-E[x]^2 in f32 with a non-negativity guard (biased, BN training).
    var = jnp.maximum(ssq / cnt - mean * mean, 0.0)
    scale = gamma.astype(f32) * jax.lax.rsqrt(var + eps)
    shift = beta.astype(f32) - mean * scale

    # ---- pass 2: conv0 recompute + BN + ReLU + conv1 + residual add --------
    kern_b = functools.partial(_fused_resblock_kernel, H=H, W=W, K=K, pad=pad,
                               off=off, res_scale=float(res_scale))
    cost_b = pl.CostEstimate(
        flops=2 * N * HW * K * K * (Cin * Cmid + Cmid * Cout)
              + 6 * N * HW * max(Cmid, Cout),
        transcendentals=0,
        bytes_accessed=4 * (N * Cin * HW + N * Cout * HW
                            + Cmid * K * K * Cin + Cout * K * K * Cmid
                            + 3 * Cmid + 2 * Cout))
    out = pl.pallas_call(
        kern_b,
        grid=(N,),
        in_specs=[
            pl.BlockSpec((1, Cin, HW), lambda n: (n, 0, 0)),
            pl.BlockSpec((Cmid, 1), lambda n: (0, 0)),
            pl.BlockSpec((Cmid, 1), lambda n: (0, 0)),
            pl.BlockSpec((Cmid, K * K * Cin), lambda n: (0, 0)),
            pl.BlockSpec((Cmid, 1), lambda n: (0, 0)),
            pl.BlockSpec((Cout, K * K * Cmid), lambda n: (0, 0)),
            pl.BlockSpec((Cout, 1), lambda n: (0, 0)),
        ],
        out_specs=pl.BlockSpec((1, Cout, HW), lambda n: (n, 0, 0)),
        out_shape=jax.ShapeDtypeStruct((N, Cout, HW), f32),
        scratch_shapes=[pltpu.VMEM((Cin, Lp), f32),
                        pltpu.VMEM((Cmid, Lp), f32)],
        compiler_params=cparams,
        cost_estimate=cost_b,
    )(x, scale.reshape(Cmid, 1), shift.reshape(Cmid, 1), w0r, b0c, w1r, b1c)

    return out.reshape(N, Cout, H, W)


def resblock_reference(x_nchw, params, *, res_scale=1.0, eps=1e-5):
    """Pure-JAX reference (lax conv) for correctness checking."""
    w0, b0 = params["w0"], params["b0"]
    gamma, beta = params["gamma"], params["beta"]
    w1, b1 = params["w1"], params["b1"]
    dn = ("NHWC", "HWIO", "NHWC")
    x = jnp.transpose(x_nchw, (0, 2, 3, 1)).astype(jnp.float32)
    y = jax.lax.conv_general_dilated(x, w0, (1, 1), "SAME",
                                     dimension_numbers=dn) + b0
    m = jnp.mean(y, axis=(0, 1, 2), keepdims=True)
    v = jnp.mean((y - m) ** 2, axis=(0, 1, 2), keepdims=True)
    y = (y - m) * gamma * jax.lax.rsqrt(v + eps) + beta
    y = jnp.maximum(y, 0.0)
    r = jax.lax.conv_general_dilated(y, w1, (1, 1), "SAME",
                                     dimension_numbers=dn) + b1
    out = x + res_scale * r
    return jnp.transpose(out, (0, 3, 1, 2))


if __name__ == "__main__":
    N, Cin, H, W = 2, 4, 16, 16
    Cmid, Cout, K = 8, 4, 3

    key = jax.random.PRNGKey(0)
    kx, k0, kb0, kg, kbt, k1, kb1 = jax.random.split(key, 7)
    x = jax.random.normal(kx, (N, Cin, H, W), jnp.float32)
    params = dict(
        w0=0.2 * jax.random.normal(k0, (K, K, Cin, Cmid), jnp.float32),
        b0=0.1 * jax.random.normal(kb0, (Cmid,), jnp.float32),
        gamma=1.0 + 0.1 * jax.random.normal(kg, (Cmid,), jnp.float32),
        beta=0.1 * jax.random.normal(kbt, (Cmid,), jnp.float32),
        w1=0.2 * jax.random.normal(k1, (K, K, Cmid, Cout), jnp.float32),
        b1=0.1 * jax.random.normal(kb1, (Cout,), jnp.float32),
    )

    fwd = jax.jit(functools.partial(resblock_forward, res_scale=1.0))
    out = jax.block_until_ready(fwd(x, params))
    ref = jax.block_until_ready(resblock_reference(x, params, res_scale=1.0))

    assert out.shape == x.shape
    np.testing.assert_allclose(np.asarray(out), np.asarray(ref),
                               rtol=5e-4, atol=5e-4)
    print("KERNEL_OK")
</pallas_src>

<mosaic_0001>
module attributes {stable_mosaic.version = 11 : i64} {
  func.func @_conv0_stats_kernel(%arg0: i32, %arg1: memref<1x4x256xf32, #tpu.memory_space<vmem>>, %arg2: memref<8x36xf32, #tpu.memory_space<vmem>>, %arg3: memref<8x1xf32, #tpu.memory_space<vmem>>, %arg4: memref<1x8x1xf32, #tpu.memory_space<vmem>>, %arg5: memref<1x8x1xf32, #tpu.memory_space<vmem>>, %arg6: memref<4x512xf32, #tpu.memory_space<vmem>>) attributes {dimension_semantics = [#tpu.dimension_semantics<parallel>], iteration_bounds = array<i64: 2>, scalar_prefetch = 0 : i64, scratch_operands = 1 : i64, tpu.core_type = #tpu.core_type<tc>, window_params = [{transform_indices = @transform_0, window_bounds = array<i64: 1, 4, 256>}, {pipeline_mode = #tpu.pipeline_mode<synchronous>, transform_indices = @transform_1, window_bounds = array<i64: 8, 36>}, {pipeline_mode = #tpu.pipeline_mode<synchronous>, transform_indices = @transform_2, window_bounds = array<i64: 8, 1>}, {transform_indices = @transform_3, window_bounds = array<i64: 1, 8, 1>}, {transform_indices = @transform_4, window_bounds = array<i64: 1, 8, 1>}]} {
    %0 = tpu.iota {dimensions = array<i32: 1>} : vector<1x256xi32>
    %c16_i32 = arith.constant 16 : i32
    %c0_i32 = arith.constant 0 : i32
    %1 = arith.cmpi eq, %c16_i32, %c0_i32 : i32
    %c1_i32 = arith.constant 1 : i32
    %2 = arith.select %1, %c1_i32, %c16_i32 : i32
    %3 = vector.broadcast %2 : i32 to vector<1x256xi32>
    %4 = arith.remsi %0, %3 : vector<1x256xi32>
    %c0_i32_0 = arith.constant 0 : i32
    %5 = vector.broadcast %c0_i32_0 : i32 to vector<1x256xi32>
    %6 = arith.cmpi ne, %4, %5 : vector<1x256xi32>
    %c0_i32_1 = arith.constant 0 : i32
    %7 = vector.broadcast %c0_i32_1 : i32 to vector<1x256xi32>
    %8 = arith.cmpi slt, %4, %7 : vector<1x256xi32>
    %c0_i32_2 = arith.constant 0 : i32
    %9 = arith.cmpi slt, %2, %c0_i32_2 : i32
    %10 = vector.broadcast %9 : i1 to vector<1x256xi1>
    %11 = vector.broadcast %10 : vector<1x256xi1> to vector<1x256xi1>
    %12 = arith.xori %8, %11 : vector<1x256xi1>
    %13 = arith.andi %12, %6 : vector<1x256xi1>
    %14 = vector.broadcast %2 : i32 to vector<1x256xi32>
    %15 = arith.addi %4, %14 : vector<1x256xi32>
    %16 = arith.select %13, %15, %4 : vector<1x256xi1>, vector<1x256xi32>
    %c-1_i32 = arith.constant -1 : i32
    %17 = vector.broadcast %c-1_i32 : i32 to vector<1x256xi32>
    %18 = arith.addi %16, %17 : vector<1x256xi32>
    %c0_i32_3 = arith.constant 0 : i32
    %19 = vector.broadcast %c0_i32_3 : i32 to vector<1x256xi32>
    %20 = arith.cmpi sge, %18, %19 : vector<1x256xi32>
    %c-1_i32_4 = arith.constant -1 : i32
    %21 = vector.broadcast %c-1_i32_4 : i32 to vector<1x256xi32>
    %22 = arith.addi %16, %21 : vector<1x256xi32>
    %c16_i32_5 = arith.constant 16 : i32
    %23 = vector.broadcast %c16_i32_5 : i32 to vector<1x256xi32>
    %24 = arith.cmpi slt, %22, %23 : vector<1x256xi32>
    %25 = arith.andi %20, %24 : vector<1x256xi1>
    %c1_i32_6 = arith.constant 1 : i32
    %26 = vector.broadcast %c1_i32_6 : i32 to vector<1x256xi32>
    %27 = arith.addi %16, %26 : vector<1x256xi32>
    %c0_i32_7 = arith.constant 0 : i32
    %28 = vector.broadcast %c0_i32_7 : i32 to vector<1x256xi32>
    %29 = arith.cmpi sge, %27, %28 : vector<1x256xi32>
    %c1_i32_8 = arith.constant 1 : i32
    %30 = vector.broadcast %c1_i32_8 : i32 to vector<1x256xi32>
    %31 = arith.addi %16, %30 : vector<1x256xi32>
    %c16_i32_9 = arith.constant 16 : i32
    %32 = vector.broadcast %c16_i32_9 : i32 to vector<1x256xi32>
    %33 = arith.cmpi slt, %31, %32 : vector<1x256xi32>
    %34 = arith.andi %29, %33 : vector<1x256xi1>
    %c0 = arith.constant 0 : index
    %c0_10 = arith.constant 0 : index
    %c0_11 = arith.constant 0 : index
    %35 = vector.load %arg1[%c0, %c0_10, %c0_11] : memref<1x4x256xf32, #tpu.memory_space<vmem>>, vector<1x4x256xf32>
    %36 = vector.shape_cast %35 : vector<1x4x256xf32> to vector<4x256xf32>
    %cst = arith.constant 0.000000e+00 : f32
    %37 = vector.broadcast %cst : f32 to vector<4x128xf32>
    %c0_12 = arith.constant 0 : index
    %c0_13 = arith.constant 0 : index
    %38 = vector.load %arg6[%c0_12, %c0_13] : memref<4x512xf32, #tpu.memory_space<vmem>>, vector<4x128xf32>
    tpu.vector_store %arg6[%c0_12, %c0_13], %37 {strides = array<i32>} : memref<4x512xf32, #tpu.memory_space<vmem>>, vector<4x128xf32>,
    %cst_14 = arith.constant 0.000000e+00 : f32
    %39 = vector.broadcast %cst_14 : f32 to vector<4x128xf32>
    %c0_15 = arith.constant 0 : index
    %c384 = arith.constant 384 : index
    %40 = vector.load %arg6[%c0_15, %c384] : memref<4x512xf32, #tpu.memory_space<vmem>>, vector<4x128xf32>
    tpu.vector_store %arg6[%c0_15, %c384], %39 {strides = array<i32>} : memref<4x512xf32, #tpu.memory_space<vmem>>, vector<4x128xf32>,
    %c0_16 = arith.constant 0 : index
    %c128 = arith.constant 128 : index
    %41 = vector.load %arg6[%c0_16, %c128] : memref<4x512xf32, #tpu.memory_space<vmem>>, vector<4x256xf32>
    tpu.vector_store %arg6[%c0_16, %c128], %36 {strides = array<i32>} : memref<4x512xf32, #tpu.memory_space<vmem>>, vector<4x256xf32>,
    %c0_17 = arith.constant 0 : index
    %c0_18 = arith.constant 0 : index
    %42 = vector.load %arg2[%c0_17, %c0_18] : memref<8x36xf32, #tpu.memory_space<vmem>>, vector<8x36xf32>
    %c0_19 = arith.constant 0 : index
    %c111 = arith.constant 111 : index
    %43 = vector.load %arg6[%c0_19, %c111] : memref<4x512xf32, #tpu.memory_space<vmem>>, vector<4x256xf32>
    %cst_20 = arith.constant 0.000000e+00 : f32
    %44 = vector.shape_cast %25 : vector<1x256xi1> to vector<1x256xi1>
    %45 = vector.broadcast %44 : vector<1x256xi1> to vector<4x256xi1>
    %46 = vector.broadcast %cst_20 : f32 to vector<4x256xf32>
    %47 = arith.select %45, %43, %46 : vector<4x256xi1>, vector<4x256xf32>
    %c0_21 = arith.constant 0 : index
    %c112 = arith.constant 112 : index
    %48 = vector.load %arg6[%c0_21, %c112] : memref<4x512xf32, #tpu.memory_space<vmem>>, vector<4x256xf32>
    %c0_22 = arith.constant 0 : index
    %c113 = arith.constant 113 : index
    %49 = vector.load %arg6[%c0_22, %c113] : memref<4x512xf32, #tpu.memory_space<vmem>>, vector<4x256xf32>
    %cst_23 = arith.constant 0.000000e+00 : f32
    %50 = vector.shape_cast %34 : vector<1x256xi1> to vector<1x256xi1>
    %51 = vector.broadcast %50 : vector<1x256xi1> to vector<4x256xi1>
    %52 = vector.broadcast %cst_23 : f32 to vector<4x256xf32>
    %53 = arith.select %51, %49, %52 : vector<4x256xi1>, vector<4x256xf32>
    %c0_24 = arith.constant 0 : index
    %c127 = arith.constant 127 : index
    %54 = vector.load %arg6[%c0_24, %c127] : memref<4x512xf32, #tpu.memory_space<vmem>>, vector<4x256xf32>
    %cst_25 = arith.constant 0.000000e+00 : f32
    %55 = vector.shape_cast %25 : vector<1x256xi1> to vector<1x256xi1>
    %56 = vector.broadcast %55 : vector<1x256xi1> to vector<4x256xi1>
    %57 = vector.broadcast %cst_25 : f32 to vector<4x256xf32>
    %58 = arith.select %56, %54, %57 : vector<4x256xi1>, vector<4x256xf32>
    %c0_26 = arith.constant 0 : index
    %c128_27 = arith.constant 128 : index
    %59 = vector.load %arg6[%c0_26, %c128_27] : memref<4x512xf32, #tpu.memory_space<vmem>>, vector<4x256xf32>
    %c0_28 = arith.constant 0 : index
    %c129 = arith.constant 129 : index
    %60 = vector.load %arg6[%c0_28, %c129] : memref<4x512xf32, #tpu.memory_space<vmem>>, vector<4x256xf32>
    %cst_29 = arith.constant 0.000000e+00 : f32
    %61 = vector.shape_cast %34 : vector<1x256xi1> to vector<1x256xi1>
    %62 = vector.broadcast %61 : vector<1x256xi1> to vector<4x256xi1>
    %63 = vector.broadcast %cst_29 : f32 to vector<4x256xf32>
    %64 = arith.select %62, %60, %63 : vector<4x256xi1>, vector<4x256xf32>
    %c0_30 = arith.constant 0 : index
    %c143 = arith.constant 143 : index
    %65 = vector.load %arg6[%c0_30, %c143] : memref<4x512xf32, #tpu.memory_space<vmem>>, vector<4x256xf32>
    %cst_31 = arith.constant 0.000000e+00 : f32
    %66 = vector.shape_cast %25 : vector<1x256xi1> to vector<1x256xi1>
    %67 = vector.broadcast %66 : vector<1x256xi1> to vector<4x256xi1>
    %68 = vector.broadcast %cst_31 : f32 to vector<4x256xf32>
    %69 = arith.select %67, %65, %68 : vector<4x256xi1>, vector<4x256xf32>
    %c0_32 = arith.constant 0 : index
    %c144 = arith.constant 144 : index
    %70 = vector.load %arg6[%c0_32, %c144] : memref<4x512xf32, #tpu.memory_space<vmem>>, vector<4x256xf32>
    %c0_33 = arith.constant 0 : index
    %c145 = arith.constant 145 : index
    %71 = vector.load %arg6[%c0_33, %c145] : memref<4x512xf32, #tpu.memory_space<vmem>>, vector<4x256xf32>
    %cst_34 = arith.constant 0.000000e+00 : f32
    %72 = vector.shape_cast %34 : vector<1x256xi1> to vector<1x256xi1>
    %73 = vector.broadcast %72 : vector<1x256xi1> to vector<4x256xi1>
    %74 = vector.broadcast %cst_34 : f32 to vector<4x256xf32>
    %75 = arith.select %73, %71, %74 : vector<4x256xi1>, vector<4x256xf32>
    %76 = tpu.concatenate %47, %48, %53, %58, %59, %64, %69, %70, %75 in 0 : vector<4x256xf32>, vector<4x256xf32>, vector<4x256xf32>, vector<4x256xf32>, vector<4x256xf32>, vector<4x256xf32>, vector<4x256xf32>, vector<4x256xf32>, vector<4x256xf32> -> vector<36x256xf32>
    %cst_35 = arith.constant dense<0.000000e+00> : vector<8x256xf32>
    %77 = tpu.matmul %42, %76, %cst_35 {dimension_numbers = #tpu.dot_dimension_numbers<[1], [0], [0], [1], [0, 0, 1, 1], [], []>} : vector<8x36xf32>, vector<36x256xf32>, vector<8x256xf32> -> vector<8x256xf32>
    %c0_36 = arith.constant 0 : index
    %c0_37 = arith.constant 0 : index
    %78 = vector.load %arg3[%c0_36, %c0_37] : memref<8x1xf32, #tpu.memory_space<vmem>>, vector<8x1xf32>
    %79 = vector.broadcast %78 : vector<8x1xf32> to vector<8x256xf32>
    %80 = arith.addf %77, %79 : vector<8x256xf32>
    %cst_38 = arith.constant dense<0.000000e+00> : vector<8xf32>
    %81 = vector.multi_reduction <add>, %80, %cst_38 [1] : vector<8x256xf32> to vector<8xf32>
    %82 = vector.shape_cast %81 : vector<8xf32> to vector<8x1xf32>
    %c0_39 = arith.constant 0 : index
    %c0_40 = arith.constant 0 : index
    %c0_41 = arith.constant 0 : index
    %83 = vector.load %arg4[%c0_39, %c0_40, %c0_41] : memref<1x8x1xf32, #tpu.memory_space<vmem>>, vector<1x8x1xf32>
    %84 = vector.shape_cast %83 : vector<1x8x1xf32> to vector<8x1xf32>
    %85 = vector.shape_cast %82 : vector<8x1xf32> to vector<1x8x1xf32>
    tpu.vector_store %arg4[%c0_39, %c0_40, %c0_41], %85 {strides = array<i32>} : memref<1x8x1xf32, #tpu.memory_space<vmem>>, vector<1x8x1xf32>,
    %86 = arith.mulf %80, %80 : vector<8x256xf32>
    %cst_42 = arith.constant dense<0.000000e+00> : vector<8xf32>
    %87 = vector.multi_reduction <add>, %86, %cst_42 [1] : vector<8x256xf32> to vector<8xf32>
    %88 = vector.shape_cast %87 : vector<8xf32> to vector<8x1xf32>
    %c0_43 = arith.constant 0 : index
    %c0_44 = arith.constant 0 : index
    %c0_45 = arith.constant 0 : index
    %89 = vector.load %arg5[%c0_43, %c0_44, %c0_45] : memref<1x8x1xf32, #tpu.memory_space<vmem>>, vector<1x8x1xf32>
    %90 = vector.shape_cast %89 : vector<1x8x1xf32> to vector<8x1xf32>
    %91 = vector.shape_cast %88 : vector<8x1xf32> to vector<1x8x1xf32>
    tpu.vector_store %arg5[%c0_43, %c0_44, %c0_45], %91 {strides = array<i32>} : memref<1x8x1xf32, #tpu.memory_space<vmem>>, vector<1x8x1xf32>,
    return
  }
  func.func @transform_0(%arg0: i32) -> (i32, i32, i32) {
    %c0_i32 = arith.constant 0 : i32
    %c0_i32_0 = arith.constant 0 : i32
    %c0_i32_1 = arith.constant 0 : i32
    return %arg0, %c0_i32, %c0_i32_0 : i32, i32, i32
  }
  func.func @transform_1(%arg0: i32) -> (i32, i32) {
    %c0_i32 = arith.constant 0 : i32
    %c0_i32_0 = arith.constant 0 : i32
    %c0_i32_1 = arith.constant 0 : i32
    return %c0_i32, %c0_i32_0 : i32, i32
  }
  func.func @transform_2(%arg0: i32) -> (i32, i32) {
    %c0_i32 = arith.constant 0 : i32
    %c0_i32_0 = arith.constant 0 : i32
    %c0_i32_1 = arith.constant 0 : i32
    return %c0_i32, %c0_i32_0 : i32, i32
  }
  func.func @transform_3(%arg0: i32) -> (i32, i32, i32) {
    %c0_i32 = arith.constant 0 : i32
    %c0_i32_0 = arith.constant 0 : i32
    %c0_i32_1 = arith.constant 0 : i32
    return %arg0, %c0_i32, %c0_i32_0 : i32, i32, i32
  }
  func.func @transform_4(%arg0: i32) -> (i32, i32, i32) {
    %c0_i32 = arith.constant 0 : i32
    %c0_i32_0 = arith.constant 0 : i32
    %c0_i32_1 = arith.constant 0 : i32
    return %arg0, %c0_i32, %c0_i32_0 : i32, i32, i32
  }
}

module attributes {stable_mosaic.version = 11 : i64} {
  func.func @_fused_resblock_kernel(%arg0: i32, %arg1: memref<1x4x256xf32, #tpu.memory_space<vmem>>, %arg2: memref<8x1xf32, #tpu.memory_space<vmem>>, %arg3: memref<8x1xf32, #tpu.memory_space<vmem>>, %arg4: memref<8x36xf32, #tpu.memory_space<vmem>>, %arg5: memref<8x1xf32, #tpu.memory_space<vmem>>, %arg6: memref<4x72xf32, #tpu.memory_space<vmem>>, %arg7: memref<4x1xf32, #tpu.memory_space<vmem>>, %arg8: memref<1x4x256xf32, #tpu.memory_space<vmem>>, %arg9: memref<4x512xf32, #tpu.memory_space<vmem>>, %arg10: memref<8x512xf32, #tpu.memory_space<vmem>>) attributes {dimension_semantics = [#tpu.dimension_semantics<parallel>], iteration_bounds = array<i64: 2>, scalar_prefetch = 0 : i64, scratch_operands = 2 : i64, tpu.core_type = #tpu.core_type<tc>, window_params = [{transform_indices = @transform_0, window_bounds = array<i64: 1, 4, 256>}, {pipeline_mode = #tpu.pipeline_mode<synchronous>, transform_indices = @transform_1, window_bounds = array<i64: 8, 1>}, {pipeline_mode = #tpu.pipeline_mode<synchronous>, transform_indices = @transform_2, window_bounds = array<i64: 8, 1>}, {pipeline_mode = #tpu.pipeline_mode<synchronous>, transform_indices = @transform_3, window_bounds = array<i64: 8, 36>}, {pipeline_mode = #tpu.pipeline_mode<synchronous>, transform_indices = @transform_4, window_bounds = array<i64: 8, 1>}, {pipeline_mode = #tpu.pipeline_mode<synchronous>, transform_indices = @transform_5, window_bounds = array<i64: 4, 72>}, {pipeline_mode = #tpu.pipeline_mode<synchronous>, transform_indices = @transform_6, window_bounds = array<i64: 4, 1>}, {transform_indices = @transform_7, window_bounds = array<i64: 1, 4, 256>}]} {
    %0 = tpu.iota {dimensions = array<i32: 1>} : vector<1x256xi32>
    %c16_i32 = arith.constant 16 : i32
    %c0_i32 = arith.constant 0 : i32
    %1 = arith.cmpi eq, %c16_i32, %c0_i32 : i32
    %c1_i32 = arith.constant 1 : i32
    %2 = arith.select %1, %c1_i32, %c16_i32 : i32
    %3 = vector.broadcast %2 : i32 to vector<1x256xi32>
    %4 = arith.remsi %0, %3 : vector<1x256xi32>
    %c0_i32_0 = arith.constant 0 : i32
    %5 = vector.broadcast %c0_i32_0 : i32 to vector<1x256xi32>
    %6 = arith.cmpi ne, %4, %5 : vector<1x256xi32>
    %c0_i32_1 = arith.constant 0 : i32
    %7 = vector.broadcast %c0_i32_1 : i32 to vector<1x256xi32>
    %8 = arith.cmpi slt, %4, %7 : vector<1x256xi32>
    %c0_i32_2 = arith.constant 0 : i32
    %9 = arith.cmpi slt, %2, %c0_i32_2 : i32
    %10 = vector.broadcast %9 : i1 to vector<1x256xi1>
    %11 = vector.broadcast %10 : vector<1x256xi1> to vector<1x256xi1>
    %12 = arith.xori %8, %11 : vector<1x256xi1>
    %13 = arith.andi %12, %6 : vector<1x256xi1>
    %14 = vector.broadcast %2 : i32 to vector<1x256xi32>
    %15 = arith.addi %4, %14 : vector<1x256xi32>
    %16 = arith.select %13, %15, %4 : vector<1x256xi1>, vector<1x256xi32>
    %c-1_i32 = arith.constant -1 : i32
    %17 = vector.broadcast %c-1_i32 : i32 to vector<1x256xi32>
    %18 = arith.addi %16, %17 : vector<1x256xi32>
    %c0_i32_3 = arith.constant 0 : i32
    %19 = vector.broadcast %c0_i32_3 : i32 to vector<1x256xi32>
    %20 = arith.cmpi sge, %18, %19 : vector<1x256xi32>
    %c-1_i32_4 = arith.constant -1 : i32
    %21 = vector.broadcast %c-1_i32_4 : i32 to vector<1x256xi32>
    %22 = arith.addi %16, %21 : vector<1x256xi32>
    %c16_i32_5 = arith.constant 16 : i32
    %23 = vector.broadcast %c16_i32_5 : i32 to vector<1x256xi32>
    %24 = arith.cmpi slt, %22, %23 : vector<1x256xi32>
    %25 = arith.andi %20, %24 : vector<1x256xi1>
    %c1_i32_6 = arith.constant 1 : i32
    %26 = vector.broadcast %c1_i32_6 : i32 to vector<1x256xi32>
    %27 = arith.addi %16, %26 : vector<1x256xi32>
    %c0_i32_7 = arith.constant 0 : i32
    %28 = vector.broadcast %c0_i32_7 : i32 to vector<1x256xi32>
    %29 = arith.cmpi sge, %27, %28 : vector<1x256xi32>
    %c1_i32_8 = arith.constant 1 : i32
    %30 = vector.broadcast %c1_i32_8 : i32 to vector<1x256xi32>
    %31 = arith.addi %16, %30 : vector<1x256xi32>
    %c16_i32_9 = arith.constant 16 : i32
    %32 = vector.broadcast %c16_i32_9 : i32 to vector<1x256xi32>
    %33 = arith.cmpi slt, %31, %32 : vector<1x256xi32>
    %34 = arith.andi %29, %33 : vector<1x256xi1>
    %c0 = arith.constant 0 : index
    %c0_10 = arith.constant 0 : index
    %c0_11 = arith.constant 0 : index
    %35 = vector.load %arg1[%c0, %c0_10, %c0_11] : memref<1x4x256xf32, #tpu.memory_space<vmem>>, vector<1x4x256xf32>
    %36 = vector.shape_cast %35 : vector<1x4x256xf32> to vector<4x256xf32>
    %cst = arith.constant 0.000000e+00 : f32
    %37 = vector.broadcast %cst : f32 to vector<4x128xf32>
    %c0_12 = arith.constant 0 : index
    %c0_13 = arith.constant 0 : index
    %38 = vector.load %arg9[%c0_12, %c0_13] : memref<4x512xf32, #tpu.memory_space<vmem>>, vector<4x128xf32>
    tpu.vector_store %arg9[%c0_12, %c0_13], %37 {strides = array<i32>} : memref<4x512xf32, #tpu.memory_space<vmem>>, vector<4x128xf32>,
    %cst_14 = arith.constant 0.000000e+00 : f32
    %39 = vector.broadcast %cst_14 : f32 to vector<4x128xf32>
    %c0_15 = arith.constant 0 : index
    %c384 = arith.constant 384 : index
    %40 = vector.load %arg9[%c0_15, %c384] : memref<4x512xf32, #tpu.memory_space<vmem>>, vector<4x128xf32>
    tpu.vector_store %arg9[%c0_15, %c384], %39 {strides = array<i32>} : memref<4x512xf32, #tpu.memory_space<vmem>>, vector<4x128xf32>,
    %c0_16 = arith.constant 0 : index
    %c128 = arith.constant 128 : index
    %41 = vector.load %arg9[%c0_16, %c128] : memref<4x512xf32, #tpu.memory_space<vmem>>, vector<4x256xf32>
    tpu.vector_store %arg9[%c0_16, %c128], %36 {strides = array<i32>} : memref<4x512xf32, #tpu.memory_space<vmem>>, vector<4x256xf32>,
    %c0_17 = arith.constant 0 : index
    %c0_18 = arith.constant 0 : index
    %42 = vector.load %arg4[%c0_17, %c0_18] : memref<8x36xf32, #tpu.memory_space<vmem>>, vector<8x36xf32>
    %c0_19 = arith.constant 0 : index
    %c111 = arith.constant 111 : index
    %43 = vector.load %arg9[%c0_19, %c111] : memref<4x512xf32, #tpu.memory_space<vmem>>, vector<4x256xf32>
    %cst_20 = arith.constant 0.000000e+00 : f32
    %44 = vector.shape_cast %25 : vector<1x256xi1> to vector<1x256xi1>
    %45 = vector.broadcast %44 : vector<1x256xi1> to vector<4x256xi1>
    %46 = vector.broadcast %cst_20 : f32 to vector<4x256xf32>
    %47 = arith.select %45, %43, %46 : vector<4x256xi1>, vector<4x256xf32>
    %c0_21 = arith.constant 0 : index
    %c112 = arith.constant 112 : index
    %48 = vector.load %arg9[%c0_21, %c112] : memref<4x512xf32, #tpu.memory_space<vmem>>, vector<4x256xf32>
    %c0_22 = arith.constant 0 : index
    %c113 = arith.constant 113 : index
    %49 = vector.load %arg9[%c0_22, %c113] : memref<4x512xf32, #tpu.memory_space<vmem>>, vector<4x256xf32>
    %cst_23 = arith.constant 0.000000e+00 : f32
    %50 = vector.shape_cast %34 : vector<1x256xi1> to vector<1x256xi1>
    %51 = vector.broadcast %50 : vector<1x256xi1> to vector<4x256xi1>
    %52 = vector.broadcast %cst_23 : f32 to vector<4x256xf32>
    %53 = arith.select %51, %49, %52 : vector<4x256xi1>, vector<4x256xf32>
    %c0_24 = arith.constant 0 : index
    %c127 = arith.constant 127 : index
    %54 = vector.load %arg9[%c0_24, %c127] : memref<4x512xf32, #tpu.memory_space<vmem>>, vector<4x256xf32>
    %cst_25 = arith.constant 0.000000e+00 : f32
    %55 = vector.shape_cast %25 : vector<1x256xi1> to vector<1x256xi1>
    %56 = vector.broadcast %55 : vector<1x256xi1> to vector<4x256xi1>
    %57 = vector.broadcast %cst_25 : f32 to vector<4x256xf32>
    %58 = arith.select %56, %54, %57 : vector<4x256xi1>, vector<4x256xf32>
    %c0_26 = arith.constant 0 : index
    %c128_27 = arith.constant 128 : index
    %59 = vector.load %arg9[%c0_26, %c128_27] : memref<4x512xf32, #tpu.memory_space<vmem>>, vector<4x256xf32>
    %c0_28 = arith.constant 0 : index
    %c129 = arith.constant 129 : index
    %60 = vector.load %arg9[%c0_28, %c129] : memref<4x512xf32, #tpu.memory_space<vmem>>, vector<4x256xf32>
    %cst_29 = arith.constant 0.000000e+00 : f32
    %61 = vector.shape_cast %34 : vector<1x256xi1> to vector<1x256xi1>
    %62 = vector.broadcast %61 : vector<1x256xi1> to vector<4x256xi1>
    %63 = vector.broadcast %cst_29 : f32 to vector<4x256xf32>
    %64 = arith.select %62, %60, %63 : vector<4x256xi1>, vector<4x256xf32>
    %c0_30 = arith.constant 0 : index
    %c143 = arith.constant 143 : index
    %65 = vector.load %arg9[%c0_30, %c143] : memref<4x512xf32, #tpu.memory_space<vmem>>, vector<4x256xf32>
    %cst_31 = arith.constant 0.000000e+00 : f32
    %66 = vector.shape_cast %25 : vector<1x256xi1> to vector<1x256xi1>
    %67 = vector.broadcast %66 : vector<1x256xi1> to vector<4x256xi1>
    %68 = vector.broadcast %cst_31 : f32 to vector<4x256xf32>
    %69 = arith.select %67, %65, %68 : vector<4x256xi1>, vector<4x256xf32>
    %c0_32 = arith.constant 0 : index
    %c144 = arith.constant 144 : index
    %70 = vector.load %arg9[%c0_32, %c144] : memref<4x512xf32, #tpu.memory_space<vmem>>, vector<4x256xf32>
    %c0_33 = arith.constant 0 : index
    %c145 = arith.constant 145 : index
    %71 = vector.load %arg9[%c0_33, %c145] : memref<4x512xf32, #tpu.memory_space<vmem>>, vector<4x256xf32>
    %cst_34 = arith.constant 0.000000e+00 : f32
    %72 = vector.shape_cast %34 : vector<1x256xi1> to vector<1x256xi1>
    %73 = vector.broadcast %72 : vector<1x256xi1> to vector<4x256xi1>
    %74 = vector.broadcast %cst_34 : f32 to vector<4x256xf32>
    %75 = arith.select %73, %71, %74 : vector<4x256xi1>, vector<4x256xf32>
    %76 = tpu.concatenate %47, %48, %53, %58, %59, %64, %69, %70, %75 in 0 : vector<4x256xf32>, vector<4x256xf32>, vector<4x256xf32>, vector<4x256xf32>, vector<4x256xf32>, vector<4x256xf32>, vector<4x256xf32>, vector<4x256xf32>, vector<4x256xf32> -> vector<36x256xf32>
    %cst_35 = arith.constant dense<0.000000e+00> : vector<8x256xf32>
    %77 = tpu.matmul %42, %76, %cst_35 {dimension_numbers = #tpu.dot_dimension_numbers<[1], [0], [0], [1], [0, 0, 1, 1], [], []>} : vector<8x36xf32>, vector<36x256xf32>, vector<8x256xf32> -> vector<8x256xf32>
    %c0_36 = arith.constant 0 : index
    %c0_37 = arith.constant 0 : index
    %78 = vector.load %arg5[%c0_36, %c0_37] : memref<8x1xf32, #tpu.memory_space<vmem>>, vector<8x1xf32>
    %79 = vector.broadcast %78 : vector<8x1xf32> to vector<8x256xf32>
    %80 = arith.addf %77, %79 : vector<8x256xf32>
    %c0_38 = arith.constant 0 : index
    %c0_39 = arith.constant 0 : index
    %81 = vector.load %arg2[%c0_38, %c0_39] : memref<8x1xf32, #tpu.memory_space<vmem>>, vector<8x1xf32>
    %82 = vector.broadcast %81 : vector<8x1xf32> to vector<8x256xf32>
    %83 = arith.mulf %80, %82 : vector<8x256xf32>
    %c0_40 = arith.constant 0 : index
    %c0_41 = arith.constant 0 : index
    %84 = vector.load %arg3[%c0_40, %c0_41] : memref<8x1xf32, #tpu.memory_space<vmem>>, vector<8x1xf32>
    %85 = vector.broadcast %84 : vector<8x1xf32> to vector<8x256xf32>
    %86 = arith.addf %83, %85 : vector<8x256xf32>
    %cst_42 = arith.constant 0.000000e+00 : f32
    %87 = vector.broadcast %cst_42 : f32 to vector<8x256xf32>
    %88 = arith.maximumf %86, %87 : vector<8x256xf32>
    %cst_43 = arith.constant 0.000000e+00 : f32
    %89 = vector.broadcast %cst_43 : f32 to vector<8x128xf32>
    %c0_44 = arith.constant 0 : index
    %c0_45 = arith.constant 0 : index
    %90 = vector.load %arg10[%c0_44, %c0_45] : memref<8x512xf32, #tpu.memory_space<vmem>>, vector<8x128xf32>
    tpu.vector_store %arg10[%c0_44, %c0_45], %89 {strides = array<i32>} : memref<8x512xf32, #tpu.memory_space<vmem>>, vector<8x128xf32>,
    %cst_46 = arith.constant 0.000000e+00 : f32
    %91 = vector.broadcast %cst_46 : f32 to vector<8x128xf32>
    %c0_47 = arith.constant 0 : index
    %c384_48 = arith.constant 384 : index
    %92 = vector.load %arg10[%c0_47, %c384_48] : memref<8x512xf32, #tpu.memory_space<vmem>>, vector<8x128xf32>
    tpu.vector_store %arg10[%c0_47, %c384_48], %91 {strides = array<i32>} : memref<8x512xf32, #tpu.memory_space<vmem>>, vector<8x128xf32>,
    %c0_49 = arith.constant 0 : index
    %c128_50 = arith.constant 128 : index
    %93 = vector.load %arg10[%c0_49, %c128_50] : memref<8x512xf32, #tpu.memory_space<vmem>>, vector<8x256xf32>
    tpu.vector_store %arg10[%c0_49, %c128_50], %88 {strides = array<i32>} : memref<8x512xf32, #tpu.memory_space<vmem>>, vector<8x256xf32>,
    %c0_51 = arith.constant 0 : index
    %c0_52 = arith.constant 0 : index
    %94 = vector.load %arg6[%c0_51, %c0_52] : memref<4x72xf32, #tpu.memory_space<vmem>>, vector<4x72xf32>
    %c0_53 = arith.constant 0 : index
    %c111_54 = arith.constant 111 : index
    %95 = vector.load %arg10[%c0_53, %c111_54] : memref<8x512xf32, #tpu.memory_space<vmem>>, vector<8x256xf32>
    %cst_55 = arith.constant 0.000000e+00 : f32
    %96 = vector.shape_cast %25 : vector<1x256xi1> to vector<1x256xi1>
    %97 = vector.broadcast %96 : vector<1x256xi1> to vector<8x256xi1>
    %98 = vector.broadcast %cst_55 : f32 to vector<8x256xf32>
    %99 = arith.select %97, %95, %98 : vector<8x256xi1>, vector<8x256xf32>
    %c0_56 = arith.constant 0 : index
    %c112_57 = arith.constant 112 : index
    %100 = vector.load %arg10[%c0_56, %c112_57] : memref<8x512xf32, #tpu.memory_space<vmem>>, vector<8x256xf32>
    %c0_58 = arith.constant 0 : index
    %c113_59 = arith.constant 113 : index
    %101 = vector.load %arg10[%c0_58, %c113_59] : memref<8x512xf32, #tpu.memory_space<vmem>>, vector<8x256xf32>
    %cst_60 = arith.constant 0.000000e+00 : f32
    %102 = vector.shape_cast %34 : vector<1x256xi1> to vector<1x256xi1>
    %103 = vector.broadcast %102 : vector<1x256xi1> to vector<8x256xi1>
    %104 = vector.broadcast %cst_60 : f32 to vector<8x256xf32>
    %105 = arith.select %103, %101, %104 : vector<8x256xi1>, vector<8x256xf32>
    %c0_61 = arith.constant 0 : index
    %c127_62 = arith.constant 127 : index
    %106 = vector.load %arg10[%c0_61, %c127_62] : memref<8x512xf32, #tpu.memory_space<vmem>>, vector<8x256xf32>
    %cst_63 = arith.constant 0.000000e+00 : f32
    %107 = vector.shape_cast %25 : vector<1x256xi1> to vector<1x256xi1>
    %108 = vector.broadcast %107 : vector<1x256xi1> to vector<8x256xi1>
    %109 = vector.broadcast %cst_63 : f32 to vector<8x256xf32>
    %110 = arith.select %108, %106, %109 : vector<8x256xi1>, vector<8x256xf32>
    %c0_64 = arith.constant 0 : index
    %c128_65 = arith.constant 128 : index
    %111 = vector.load %arg10[%c0_64, %c128_65] : memref<8x512xf32, #tpu.memory_space<vmem>>, vector<8x256xf32>
    %c0_66 = arith.constant 0 : index
    %c129_67 = arith.constant 129 : index
    %112 = vector.load %arg10[%c0_66, %c129_67] : memref<8x512xf32, #tpu.memory_space<vmem>>, vector<8x256xf32>
    %cst_68 = arith.constant 0.000000e+00 : f32
    %113 = vector.shape_cast %34 : vector<1x256xi1> to vector<1x256xi1>
    %114 = vector.broadcast %113 : vector<1x256xi1> to vector<8x256xi1>
    %115 = vector.broadcast %cst_68 : f32 to vector<8x256xf32>
    %116 = arith.select %114, %112, %115 : vector<8x256xi1>, vector<8x256xf32>
    %c0_69 = arith.constant 0 : index
    %c143_70 = arith.constant 143 : index
    %117 = vector.load %arg10[%c0_69, %c143_70] : memref<8x512xf32, #tpu.memory_space<vmem>>, vector<8x256xf32>
    %cst_71 = arith.constant 0.000000e+00 : f32
    %118 = vector.shape_cast %25 : vector<1x256xi1> to vector<1x256xi1>
    %119 = vector.broadcast %118 : vector<1x256xi1> to vector<8x256xi1>
    %120 = vector.broadcast %cst_71 : f32 to vector<8x256xf32>
    %121 = arith.select %119, %117, %120 : vector<8x256xi1>, vector<8x256xf32>
    %c0_72 = arith.constant 0 : index
    %c144_73 = arith.constant 144 : index
    %122 = vector.load %arg10[%c0_72, %c144_73] : memref<8x512xf32, #tpu.memory_space<vmem>>, vector<8x256xf32>
    %c0_74 = arith.constant 0 : index
    %c145_75 = arith.constant 145 : index
    %123 = vector.load %arg10[%c0_74, %c145_75] : memref<8x512xf32, #tpu.memory_space<vmem>>, vector<8x256xf32>
    %cst_76 = arith.constant 0.000000e+00 : f32
    %124 = vector.shape_cast %34 : vector<1x256xi1> to vector<1x256xi1>
    %125 = vector.broadcast %124 : vector<1x256xi1> to vector<8x256xi1>
    %126 = vector.broadcast %cst_76 : f32 to vector<8x256xf32>
    %127 = arith.select %125, %123, %126 : vector<8x256xi1>, vector<8x256xf32>
    %128 = tpu.concatenate %99, %100, %105, %110, %111, %116, %121, %122, %127 in 0 : vector<8x256xf32>, vector<8x256xf32>, vector<8x256xf32>, vector<8x256xf32>, vector<8x256xf32>, vector<8x256xf32>, vector<8x256xf32>, vector<8x256xf32>, vector<8x256xf32> -> vector<72x256xf32>
    %cst_77 = arith.constant dense<0.000000e+00> : vector<4x256xf32>
    %129 = tpu.matmul %94, %128, %cst_77 {dimension_numbers = #tpu.dot_dimension_numbers<[1], [0], [0], [1], [0, 0, 1, 1], [], []>} : vector<4x72xf32>, vector<72x256xf32>, vector<4x256xf32> -> vector<4x256xf32>
    %c0_78 = arith.constant 0 : index
    %c0_79 = arith.constant 0 : index
    %130 = vector.load %arg7[%c0_78, %c0_79] : memref<4x1xf32, #tpu.memory_space<vmem>>, vector<4x1xf32>
    %131 = vector.broadcast %130 : vector<4x1xf32> to vector<4x256xf32>
    %132 = arith.addf %129, %131 : vector<4x256xf32>
    %c0_80 = arith.constant 0 : index
    %c0_81 = arith.constant 0 : index
    %c0_82 = arith.constant 0 : index
    %133 = vector.load %arg1[%c0_80, %c0_81, %c0_82] : memref<1x4x256xf32, #tpu.memory_space<vmem>>, vector<1x4x256xf32>
    %134 = vector.shape_cast %133 : vector<1x4x256xf32> to vector<4x256xf32>
    %cst_83 = arith.constant 1.000000e+00 : f32
    %135 = vector.broadcast %cst_83 : f32 to vector<4x256xf32>
    %136 = arith.mulf %135, %132 : vector<4x256xf32>
    %137 = arith.addf %134, %136 : vector<4x256xf32>
    %c0_84 = arith.constant 0 : index
    %c0_85 = arith.constant 0 : index
    %c0_86 = arith.constant 0 : index
    %138 = vector.load %arg8[%c0_84, %c0_85, %c0_86] : memref<1x4x256xf32, #tpu.memory_space<vmem>>, vector<1x4x256xf32>
    %139 = vector.shape_cast %138 : vector<1x4x256xf32> to vector<4x256xf32>
    %140 = vector.shape_cast %137 : vector<4x256xf32> to vector<1x4x256xf32>
    tpu.vector_store %arg8[%c0_84, %c0_85, %c0_86], %140 {strides = array<i32>} : memref<1x4x256xf32, #tpu.memory_space<vmem>>, vector<1x4x256xf32>,
    return
  }
  func.func @transform_0(%arg0: i32) -> (i32, i32, i32) {
    %c0_i32 = arith.constant 0 : i32
    %c0_i32_0 = arith.constant 0 : i32
    %c0_i32_1 = arith.constant 0 : i32
    return %arg0, %c0_i32, %c0_i32_0 : i32, i32, i32
  }
  func.func @transform_1(%arg0: i32) -> (i32, i32) {
    %c0_i32 = arith.constant 0 : i32
    %c0_i32_0 = arith.constant 0 : i32
    %c0_i32_1 = arith.constant 0 : i32
    return %c0_i32, %c0_i32_0 : i32, i32
  }
  func.func @transform_2(%arg0: i32) -> (i32, i32) {
    %c0_i32 = arith.constant 0 : i32
    %c0_i32_0 = arith.constant 0 : i32
    %c0_i32_1 = arith.constant 0 : i32
    return %c0_i32, %c0_i32_0 : i32, i32
  }
  func.func @transform_3(%arg0: i32) -> (i32, i32) {
    %c0_i32 = arith.constant 0 : i32
    %c0_i32_0 = arith.constant 0 : i32
    %c0_i32_1 = arith.constant 0 : i32
    return %c0_i32, %c0_i32_0 : i32, i32
  }
  func.func @transform_4(%arg0: i32) -> (i32, i32) {
    %c0_i32 = arith.constant 0 : i32
    %c0_i32_0 = arith.constant 0 : i32
    %c0_i32_1 = arith.constant 0 : i32
    return %c0_i32, %c0_i32_0 : i32, i32
  }
  func.func @transform_5(%arg0: i32) -> (i32, i32) {
    %c0_i32 = arith.constant 0 : i32
    %c0_i32_0 = arith.constant 0 : i32
    %c0_i32_1 = arith.constant 0 : i32
    return %c0_i32, %c0_i32_0 : i32, i32
  }
  func.func @transform_6(%arg0: i32) -> (i32, i32) {
    %c0_i32 = arith.constant 0 : i32
    %c0_i32_0 = arith.constant 0 : i32
    %c0_i32_1 = arith.constant 0 : i32
    return %c0_i32, %c0_i32_0 : i32, i32
  }
  func.func @transform_7(%arg0: i32) -> (i32, i32, i32) {
    %c0_i32 = arith.constant 0 : i32
    %c0_i32_0 = arith.constant 0 : i32
    %c0_i32_1 = arith.constant 0 : i32
    return %arg0, %c0_i32, %c0_i32_0 : i32, i32, i32
  }
}

</mosaic_0001>

<llo_original>
// kernel: resblock_forward.2
$region0: #{resblock_forward.2}
  #allocation0 [shape = 'u32[]', space=smem, size = 0x4, offset = 0x4, fixed_abs, tag = 'smem constant byte address 0x4 - core index']
  #allocation1 [shape = 'u32[144,128]{1,0:T(1,128)}', space=vmem, size = 0x12000, scoped, tag = 'internal scratch']
  #allocation2 [shape = 'f32[4,512]{1,0:T(4,128)}', space=vmem, size = 0x2000, scoped, tag = 'scratch operand']
  %s0 = inlined_call_operand.vmem [shape: f32[2,4,256], index: 0, kind: input, shape index: {}]
  %s1 = inlined_call_operand.vmem [shape: f32[8,36], index: 1, kind: input, shape index: {}]
  %s2 = inlined_call_operand.vmem [shape: f32[8,1], index: 2, kind: input, shape index: {}]
  %s3 = inlined_call_operand.vmem [shape: f32[2,8,1], index: 3, kind: output, shape index: {0}]
  %s4 = inlined_call_operand.vmem [shape: f32[2,8,1], index: 4, kind: output, shape index: {1}]
  %5 = xla_tuple %s3, %s4
  %s6 = sld [smem:[#allocation0]]
  $region53: #{resblock_forward.2} parent=0
    _
  %s8 = ssub.s32 1, %s6
  %s9 = scalar_select 0, %s8, %s6
  loop: start=0, step=1, limit=4
  $region2: #{resblock_forward.2} parent=0 // loop_pre_header
    _
  $region3: #{resblock_forward.2} parent=0 // loop_header
    %s11 = sphi 0, %s15
    %p12 = scmp.ge.s32.totalorder %s11, 4
    %s21 = sphi 0, %s23
    %s24 = sphi 0, %s21
    %s25 = sphi 0, %s24
    %s41 = sphi 0, %s25
    %s45 = sphi 0, %s45
    %s47 = sphi 0, %s45
    %s48 = sphi 0, %s47
    %s62 = sphi 0, %s48
    %s66 = sphi 0, %s66
    %s68 = sphi 0, %s66
    %s69 = sphi 0, %s68
    %s83 = sphi 0, %s69
    %s89 = sphi 0, %s91
    %s92 = sphi 0, %s89
    %s93 = sphi 0, %s92
    %s109 = sphi 0, %s93
    %s115 = sphi 0, %s117
    %s118 = sphi 0, %s115
    %s119 = sphi 0, %s118
    %s135 = sphi 0, %s119
  $region4: #{resblock_forward.2} parent=0 // loop_header_branch
    %14 = sbr.rel (%p12) target = $region8
  $region5: #{resblock_forward.2} parent=0 // loop_body
    %s16 = ssub.s32 %s11, 1
    %s17 = ssub.s32 %s11, 2
    %s18 = sadd.s32 %s11, 1
    %s19 = ssub.s32 %s11, %s18
    %p20 = scmp.eq.s32.totalorder %s19, 0
    %s22 = sadd.s32 %s21, 1
    %s23 = scalar_select %p20, %s21, %s22
    %p26 = pneg %p20
    %p27 = scmp.eq.s32.totalorder %s11, 1
    %p28 = por %p26, %p27
    %p29 = scmp.ne.s32.totalorder %s21, %s24
    %p30 = scmp.eq.s32.totalorder %s11, 0
    %p31 = por %p29, %p30
    %p32 = scmp.ne.s32.totalorder %s21, %s24
    %p33 = scmp.eq.s32.totalorder %s16, 1
    %p34 = por %p32, %p33
    %p35 = scmp.ne.s32.totalorder %s24, %s25
    %p36 = scmp.eq.s32.totalorder %s16, 0
    %p37 = por %p35, %p36
    %p38 = scmp.ne.s32.totalorder %s24, %s25
    %p39 = scmp.eq.s32.totalorder %s17, 1
    %p40 = por %p38, %p39
    %p42 = scmp.ne.s32.totalorder %s25, %s41
    %p43 = scmp.eq.s32.totalorder %s17, 0
    %p44 = por %p42, %p43
    %s46 = sadd.s32 %s45, 1
    %p49 = scmp.eq.s32.totalorder %s11, 1
    %p50 = scmp.ne.s32.totalorder %s45, %s47
    %p51 = scmp.eq.s32.totalorder %s11, 0
    %p52 = por %p50, %p51
    %p53 = scmp.ne.s32.totalorder %s45, %s47
    %p54 = scmp.eq.s32.totalorder %s16, 1
    %p55 = por %p53, %p54
    %p56 = scmp.ne.s32.totalorder %s47, %s48
    %p57 = scmp.eq.s32.totalorder %s16, 0
    %p58 = por %p56, %p57
    %p59 = scmp.ne.s32.totalorder %s47, %s48
    %p60 = scmp.eq.s32.totalorder %s17, 1
    %p61 = por %p59, %p60
    %p63 = scmp.ne.s32.totalorder %s48, %s62
    %p64 = scmp.eq.s32.totalorder %s17, 0
    %p65 = por %p63, %p64
    %s67 = sadd.s32 %s66, 1
    %p70 = scmp.eq.s32.totalorder %s11, 1
    %p71 = scmp.ne.s32.totalorder %s66, %s68
    %p72 = scmp.eq.s32.totalorder %s11, 0
    %p73 = por %p71, %p72
    %p74 = scmp.ne.s32.totalorder %s66, %s68
    %p75 = scmp.eq.s32.totalorder %s16, 1
    %p76 = por %p74, %p75
    %p77 = scmp.ne.s32.totalorder %s68, %s69
    %p78 = scmp.eq.s32.totalorder %s16, 0
    %p79 = por %p77, %p78
    %p80 = scmp.ne.s32.totalorder %s68, %s69
    %p81 = scmp.eq.s32.totalorder %s17, 1
    %p82 = por %p80, %p81
    %p84 = scmp.ne.s32.totalorder %s69, %s83
    %p85 = scmp.eq.s32.totalorder %s17, 0
    %p86 = por %p84, %p85
    %s87 = ssub.s32 %s11, %s18
    %p88 = scmp.eq.s32.totalorder %s87, 0
    %s90 = sadd.s32 %s89, 1
    %s91 = scalar_select %p88, %s89, %s90
    %p94 = pneg %p88
    %p95 = scmp.eq.s32.totalorder %s11, 1
    %p96 = por %p94, %p95
    %p97 = scmp.ne.s32.totalorder %s89, %s92
    %p98 = scmp.eq.s32.totalorder %s11, 0
    %p99 = por %p97, %p98
    %p100 = scmp.ne.s32.totalorder %s89, %s92
    %p101 = scmp.eq.s32.totalorder %s16, 1
    %p102 = por %p100, %p101
    %p103 = scmp.ne.s32.totalorder %s92, %s93
    %p104 = scmp.eq.s32.totalorder %s16, 0
    %p105 = por %p103, %p104
    %p106 = scmp.ne.s32.totalorder %s92, %s93
    %p107 = scmp.eq.s32.totalorder %s17, 1
    %p108 = por %p106, %p107
    %p110 = scmp.ne.s32.totalorder %s93, %s109
    %p111 = scmp.eq.s32.totalorder %s17, 0
    %p112 = por %p110, %p111
    %s113 = ssub.s32 %s11, %s18
    %p114 = scmp.eq.s32.totalorder %s113, 0
    %s116 = sadd.s32 %s115, 1
    %s117 = scalar_select %p114, %s115, %s116
    %p120 = pneg %p114
    %p121 = scmp.eq.s32.totalorder %s11, 1
    %p122 = por %p120, %p121
    %p123 = scmp.ne.s32.totalorder %s115, %s118
    %p124 = scmp.eq.s32.totalorder %s11, 0
    %p125 = por %p123, %p124
    %p126 = scmp.ne.s32.totalorder %s115, %s118
    %p127 = scmp.eq.s32.totalorder %s16, 1
    %p128 = por %p126, %p127
    %p129 = scmp.ne.s32.totalorder %s118, %s119
    %p130 = scmp.eq.s32.totalorder %s16, 0
    %p131 = por %p129, %p130
    %p132 = scmp.ne.s32.totalorder %s118, %s119
    %p133 = scmp.eq.s32.totalorder %s17, 1
    %p134 = por %p132, %p133
    %p136 = scmp.ne.s32.totalorder %s119, %s135
    %p137 = scmp.eq.s32.totalorder %s17, 0
    %p138 = por %p136, %p137
    %p139 = scmp.le.s32.totalorder 1, %s11
    %p140 = scmp.lt.s32.totalorder %s11, 3
    %p141 = pnand %p139, %p140
    %p142 = pneg %p141
    // Predicated region
    $region9: #{resblock_forward.2} parent=5 // pred_check
      _
    $region10: #{resblock_forward.2} parent=5 // pred_check_branch
      %144 = sbr.rel (%p141) target = $region12
    $region11: #{resblock_forward.2} parent=5 // pred_region
      %s145 = ssub.s32 %s11, 1
      // Predicated region
      $region13: #{resblock_forward.2} parent=11 // pred_check
        %p146 = pneg %p58
      $region14: #{resblock_forward.2} parent=11 // pred_check_branch
        %148 = sbr.rel (%p146) target = $region16
      $region15: #{resblock_forward.2} parent=11 // pred_region
        _
      $region16: #{resblock_forward.2} parent=11 // pred_fallthru
        _
      // Predicated region
      $region17: #{resblock_forward.2} parent=11 // pred_check
        %p149 = pneg %p79
      $region18: #{resblock_forward.2} parent=11 // pred_check_branch
        %151 = sbr.rel (%p149) target = $region20
      $region19: #{resblock_forward.2} parent=11 // pred_region
        _
      $region20: #{resblock_forward.2} parent=11 // pred_fallthru
        _
    $region12: #{resblock_forward.2} parent=5 // pred_fallthru
      _
    %p152 = scmp.lt.s32.totalorder %s11, 2
    // Predicated region
    $region21: #{resblock_forward.2} parent=5 // pred_check
      %p153 = pneg %p152
    $region22: #{resblock_forward.2} parent=5 // pred_check_branch
      %155 = sbr.rel (%p153) target = $region24
    $region23: #{resblock_forward.2} parent=5 // pred_region
      // Predicated region
      $region25: #{resblock_forward.2} parent=23 // pred_check
        %p156 = pneg %p31
      $region26: #{resblock_forward.2} parent=23 // pred_check_branch
        %158 = sbr.rel (%p156) target = $region28
      $region27: #{resblock_forward.2} parent=23 // pred_region
        %p159 = scmp.lt.s32.totalorder %s11, 1
        %s160 = scalar_select %p159, %s11, 1
        %s161 = smul.addr %s160, 2
        %s162 = smul.addr %s161, 4
        %s163 = scalar_lea.vmem %s0, %s162
      $region28: #{resblock_forward.2} parent=23 // pred_fallthru
        _
    $region24: #{resblock_forward.2} parent=5 // pred_fallthru
      _
    %p164 = scmp.le.s32.totalorder 1, %s11
    %p165 = scmp.lt.s32.totalorder %s11, 3
    %p166 = pnand %p164, %p165
    %p167 = pneg %p166
    // Predicated region
    $region29: #{resblock_forward.2} parent=5 // pred_check
      _
    $region30: #{resblock_forward.2} parent=5 // pred_check_branch
      %169 = sbr.rel (%p166) target = $region32
    $region31: #{resblock_forward.2} parent=5 // pred_region
      %s170 = ssub.s32 %s11, 1
      %p171 = scmp.lt.s32.totalorder %s16, 1
      %s172 = scalar_select %p171, %s16, 1
      %s173 = smul.addr %s172, 2
      %s174 = smul.addr %s173, 4
      %s175 = scalar_lea.vmem %s0, %s174
      %p176 = pneg %p37
      %p177 = pneg %p34
      %p178 = pneg %p58
      %p179 = pneg %p55
      %p180 = pneg %p79
      %p181 = pneg %p76
      %p182 = pneg %p105
      %p183 = pneg %p102
      %p184 = scmp.lt.s32.totalorder %s16, 1
      %s185 = scalar_select %p184, %s16, 1
      %s186 = smul.addr %s185, 8
      %s187 = scalar_lea.vmem %s3, %s186
      %p188 = pneg %p131
      %p189 = pneg %p128
      %p190 = scmp.lt.s32.totalorder %s16, 1
      %s191 = scalar_select %p190, %s16, 1
      %s192 = smul.addr %s191, 8
      %s193 = scalar_lea.vmem %s4, %s192
      %p194 = scmp.lt.s32.totalorder %s16, 1
      %s195 = scalar_select %p194, %s16, 1
      %s196 = smul.addr %s195, 2
      %s197 = smul.addr %s196, 4
      %s198 = scalar_lea.vmem %s0, %s197
      %p199 = scmp.lt.s32.totalorder %s16, 1
      %s200 = scalar_select %p199, %s16, 1
      %s201 = smul.addr %s200, 8
      %s202 = scalar_lea.vmem %s3, %s201
      %p203 = scmp.lt.s32.totalorder %s16, 1
      %s204 = scalar_select %p203, %s16, 1
      %s205 = smul.addr %s204, 8
      %s206 = scalar_lea.vmem %s4, %s205
      %v207 = vlaneseq
      %v208 = vand.u32 %v207, 127
      %v209 = vadd.s32 %v208, 128
      %vm210 = vcmp.lt.s32.totalorder %v208, 0
      %v211 = vsub.s32 0, %v208
      %v212 = vsel %vm210, %v211, %v208
      %v213 = vshrl.u32 %v212, 4
      %v214 = vand.u32 %v212, 15
      %v215 = vsub.s32 0, %v214
      %v216 = vsel %vm210, %v215, %v214
      %vm217 = vcmp.lt.s32.totalorder %v209, 0
      %v218 = vsub.s32 0, %v209
      %v219 = vsel %vm217, %v218, %v209
      %v220 = vshrl.u32 %v219, 4
      %v221 = vand.u32 %v219, 15
      %v222 = vsub.s32 0, %v221
      %v223 = vsel %vm217, %v222, %v221
      %vm224 = vcmp.ne.s32.totalorder %v216, 0
      %vm225 = vcmp.ne.s32.totalorder %v223, 0
      %vm226 = vcmp.lt.s32.totalorder %v216, 0
      %vm227 = vcmp.lt.s32.totalorder %v223, 0
      %vm228 = vmand %vm226, %vm224
      %vm229 = vmand %vm227, %vm225
      %v230 = vadd.s32 %v216, 16
      %v231 = vadd.s32 %v223, 16
      %v232 = vsel %vm228, %v230, %v216
      %v233 = vsel %vm229, %v231, %v223
      %v234 = vadd.s32 %v232, 4294967295
      %v235 = vadd.s32 %v233, 4294967295
      %vm236 = vcmp.ge.s32.totalorder %v234, 0
      %vm237 = vcmp.ge.s32.totalorder %v235, 0
      %vm238 = vcmp.lt.s32.totalorder %v234, 16
      %vm239 = vcmp.lt.s32.totalorder %v235, 16
      %vm240 = vmand %vm236, %vm238
      %vm241 = vmand %vm237, %vm239
      %v242 = vadd.s32 %v232, 1
      %v243 = vadd.s32 %v233, 1
      %vm244 = vcmp.ge.s32.totalorder %v242, 0
      %vm245 = vcmp.ge.s32.totalorder %v243, 0
      %vm246 = vcmp.lt.s32.totalorder %v242, 16
      %vm247 = vcmp.lt.s32.totalorder %v243, 16
      %vm248 = vmand %vm244, %vm246
      %vm249 = vmand %vm245, %vm247
      %v250 = vld [vmem:[%s198] sm:$0xff]
      %251 = vst [vmem:[#allocation2] sm:$0xf] 0.0
      %252 = vst [vmem:[#allocation2 + $0xc] sm:$0xf] 0.0
      %253 = vst [vmem:[#allocation2 + $0x4] sm:$0xff] %v250
      %v254 = vld [vmem:[%s1] sm:$0xff]
      %v255 = vld [vmem:[#allocation2] sm:$0xff]
      %v256 = vld [vmem:[#allocation2 + $0x8] sm:$0xf]
      %v257 = vsel %vm240, 1, 0
      %v258 = vsel %vm241, 1, 0
      %vm259 = vcmp.eq.s32.totalorder %v257, 1
      %vm260 = vcmp.eq.s32.totalorder %v258, 1
      %v263 = vcombine.high %v255, %v255
      %264 = vrot.lane.b32.xlu0 %v255, 17
      %v265 = vpop.permute.xlu0 %264
      %266 = vrot.lane.b32.xlu0 %v263, 17
      %v267 = vpop.permute.xlu0 %266
      %268 = vrot.lane.b32.xlu0 %v256, 17
      %v269 = vpop.permute.xlu0 %268
      %vm270 = vcmask 138240
      %v271 = vsel %vm270, %v265, %v267
      %v272 = vsel %vm270, %v267, %v269
      %v275 = vsel %vm259, %v271, 0.0
      %v276 = vsel %vm260, %v272, 0.0
      %v277 = vsel %vm248, 1, 0
      %v278 = vsel %vm249, 1, 0
      %vm279 = vcmp.eq.s32.totalorder %v277, 1
      %vm280 = vcmp.eq.s32.totalorder %v278, 1
      %281 = vrot.lane.b32.xlu0 %v255, 15
      %v282 = vpop.permute.xlu0 %281
      %283 = vrot.lane.b32.xlu0 %v263, 15
      %v284 = vpop.permute.xlu0 %283
      %285 = vrot.lane.b32.xlu0 %v256, 15
      %v286 = vpop.permute.xlu0 %285
      %vm287 = vcmask 121856
      %v288 = vsel %vm287, %v282, %v284
      %v289 = vsel %vm287, %v284, %v286
      %v292 = vsel %vm279, %v288, 0.0
      %v293 = vsel %vm280, %v289, 0.0
      %294 = vrot.lane.b32.xlu0 %v255, 1
      %v295 = vpop.permute.xlu0 %294
      %296 = vrot.lane.b32.xlu0 %v263, 1
      %v297 = vpop.permute.xlu0 %296
      %298 = vrot.lane.b32.xlu0 %v256, 1
      %v299 = vpop.permute.xlu0 %298
      %vm300 = vcmask 7168
      %v301 = vsel %vm300, %v295, %v297
      %v302 = vsel %vm300, %v297, %v299
      %v305 = vsel %vm259, %v301, 0.0
      %v306 = vsel %vm260, %v302, 0.0
      %v307 = vld [vmem:[#allocation2 + $0x4] sm:$0xff]
      %v308 = vld [vmem:[#allocation2 + $0x4] sm:$0xff]
      %v309 = vld [vmem:[#allocation2 + $0xc] sm:$0xf]
      %v312 = vcombine.high %v308, %v308
      %313 = vrot.lane.b32.xlu0 %v308, 127
      %v314 = vpop.permute.xlu0 %313
      %315 = vrot.lane.b32.xlu0 %v312, 127
      %v316 = vpop.permute.xlu0 %315
      %317 = vrot.lane.b32.xlu0 %v309, 127
      %v318 = vpop.permute.xlu0 %317
      %vm319 = vcmask 1039360
      %v320 = vsel %vm319, %v314, %v316
      %v321 = vsel %vm319, %v316, %v318
      %v324 = vsel %vm279, %v320, 0.0
      %v325 = vsel %vm280, %v321, 0.0
      %326 = vrot.lane.b32.xlu0 %v308, 113
      %v327 = vpop.permute.xlu0 %326
      %328 = vrot.lane.b32.xlu0 %v312, 113
      %v329 = vpop.permute.xlu0 %328
      %330 = vrot.lane.b32.xlu0 %v309, 113
      %v331 = vpop.permute.xlu0 %330
      %vm332 = vcmask 924672
      %v333 = vsel %vm332, %v327, %v329
      %v334 = vsel %vm332, %v329, %v331
      %v337 = vsel %vm259, %v333, 0.0
      %v338 = vsel %vm260, %v334, 0.0
      %339 = vrot.lane.b32.xlu0 %v308, 111
      %v340 = vpop.permute.xlu0 %339
      %341 = vrot.lane.b32.xlu0 %v312, 111
      %v342 = vpop.permute.xlu0 %341
      %343 = vrot.lane.b32.xlu0 %v309, 111
      %v344 = vpop.permute.xlu0 %343
      %vm345 = vcmask 908288
      %v346 = vsel %vm345, %v340, %v342
      %v347 = vsel %vm345, %v342, %v344
      %v350 = vsel %vm279, %v346, 0.0
      %v351 = vsel %vm280, %v347, 0.0
      %v352 = vcombine.low %v255, %v255
      %v353 = vcombine.low %v256, %v256
      %354 = vrot.lane.b32.xlu0 %v352, 16
      %v355 = vpop.permute.xlu0 %354
      %356 = vrot.lane.b32.xlu0 %v255, 16
      %v357 = vpop.permute.xlu0 %356
      %358 = vrot.lane.b32.xlu0 %v353, 16
      %v359 = vpop.permute.xlu0 %358
      %vm360 = vcmask 130048
      %v361 = vsel %vm360, %v355, %v357
      %v362 = vsel %vm360, %v357, %v359
      %v367 = vrot.slane %v305, 4
      %v368 = vrot.slane %v306, 4
      %v372 = vcombine.high %v307, %v307
      %v376 = vrot.slane %v324, 4
      %v377 = vrot.slane %v325, 4
      %v380 = vcombine.low %v308, %v308
      %v381 = vcombine.low %v309, %v309
      %382 = vrot.lane.b32.xlu0 %v380, 112
      %v383 = vpop.permute.xlu0 %382
      %384 = vrot.lane.b32.xlu0 %v308, 112
      %v385 = vpop.permute.xlu0 %384
      %386 = vrot.lane.b32.xlu0 %v381, 112
      %v387 = vpop.permute.xlu0 %386
      %vm388 = vcmask 916480
      %v389 = vsel %vm388, %v383, %v385
      %v390 = vsel %vm388, %v385, %v387
      %vm393 = vcmask 1043456
      %v394 = vsel %vm393, %v275, %v361
      %v395 = vsel %vm393, %v276, %v362
      %v396 = vsel %vm393, %v292, %v367
      %v397 = vsel %vm393, %v293, %v368
      %v398 = vsel %vm393, %v307, %v376
      %v399 = vsel %vm393, %v372, %v377
      %v400 = vsel %vm393, %v337, %v389
      %v401 = vsel %vm393, %v338, %v390
      %v402 = vld [vmem:[%s2] sm:$0xff]
      %404 = vset.pattern.permute.xlu0 0
      %405 = vperm.xlu0 %404, %v402
      %v406 = vpop.permute.xlu0 %405
      %vm408 = vcmask 293888
      %v410 = vsel %vm408, %v254, 0
      %v413 = vsel %vm393, %v350, 0
      %v416 = vsel %vm393, %v351, 0
      %418 = vmatprep.subr.mxu0 %v395
      %419 = vmatpush1.msra.mxu0 %v394
      %420 = vmatprep.subr.mxu0 %v397
      %421 = vmatpush1.msra.mxu0 %v396
      %422 = vmatprep.subr.mxu0 %v399
      %423 = vmatpush1.msra.mxu0 %v398
      %424 = vmatprep.subr.mxu0 %v401
      %425 = vmatpush1.msra.mxu0 %v400
      %426 = vmatprep.subr.mxu0 %v416
      %427 = vmatpush1.msra.mxu0 %v413
      %428 = vmatprep.subr.mxu0 0.0
      %429 = vmatpush1.msra.mxu0 0.0
      %430 = vmatprep.subr.mxu0 0.0
      %431 = vmatpush1.msra.mxu0 0.0
      %432 = vmatprep.subr.mxu0 0.0
      %433 = vmatpush1.msra.mxu0 0.0
      %434 = vmatprep.subr.mxu0 0.0
      %435 = vmatpush1.msra.mxu0 0.0
      %436 = vmatprep.subr.mxu0 0.0
      %437 = vmatpush1.msra.mxu0 0.0
      %438 = vmatprep.subr.mxu0 0.0
      %439 = vmatpush1.msra.mxu0 0.0
      %440 = vmatprep.subr.mxu0 0.0
      %441 = vmatpush1.msra.mxu0 0.0
      %442 = vmatprep.subr.mxu0 0.0
      %443 = vmatpush1.msra.mxu0 0.0
      %444 = vmatprep.subr.mxu0 0.0
      %445 = vmatpush1.msra.mxu0 0.0
      %446 = vmatprep.subr.mxu0 0.0
      %447 = vmatpush1.msra.mxu0 0.0
      %448 = vmatprep.subr.mxu0 0.0
      %449 = vmatpush1.msra.mxu0 0.0
      %450 = vmatprep.subr.mxu0 0.0
      %451 = vmatpush1.msra.mxu0 0.0
      %452 = vmatprep.subr.mxu0 0.0
      %453 = vmatpush1.msra.mxu0 0.0
      %454 = vmatprep.subr.mxu0 0.0
      %455 = vmatpush1.msra.mxu0 0.0
      %456 = vmatprep.subr.mxu0 0.0
      %457 = vmatpush1.msra.mxu0 0.0
      %458 = vmatprep.subr.mxu0 0.0
      %459 = vmatpush1.msra.mxu0 0.0
      %460 = vmatprep.subr.mxu0 0.0
      %461 = vmatpush1.msra.mxu0 0.0
      %462 = vmatprep.subr.mxu0 0.0
      %463 = vmatpush1.msra.mxu0 0.0
      %464 = vmatprep.subr.mxu0 0.0
      %465 = vmatpush1.msra.mxu0 0.0
      %466 = vmatprep.subr.mxu0 0.0
      %467 = vmatpush1.msra.mxu0 0.0
      %468 = vmatprep.subr.mxu0 0.0
      %469 = vmatpush1.msra.mxu0 0.0
      %470 = vmatprep.subr.mxu0 0.0
      %471 = vmatpush1.msra.mxu0 0.0
      %472 = vmatprep.subr.mxu0 0.0
      %473 = vmatpush1.msra.mxu0 0.0
      %474 = vmatprep.subr.mxu0 0.0
      %475 = vmatpush1.msra.mxu0 0.0
      %476 = vmatprep.subr.mxu0 0.0
      %477 = vmatpush1.msra.mxu0 0.0
      %478 = vmatprep.subr.mxu0 0.0
      %479 = vmatpush1.msra.mxu0 0.0
      %480 = vmatprep.subr.mxu0 0.0
      %481 = vmatpush1.msra.mxu0 0.0
      %482 = vmatprep.mubr.f32.mxu0 0.0
      %483 = vmatmul.mubr.f32.gmra.mrb[0].mxu0 %v410
      %v484 = vpop.f32.mrb[0].mxu0
      %v485 = vadd.f32 %v406, %v484
      %v486 = vpop.f32.mrb[0].mxu0
      %v487 = vadd.f32 %v406, %v486
      %488 = vdwg.mxu0
      %v489 = vadd.f32 %v485, %v487
      %490 = vadd.xlane.f32.xlu0 %v489
      %v491 = vpop.xlane.xlu0 %490
      %492 = vst.msk [vmem:[%s202] sm:$0xff] %vm300, %v491
      %v493 = vmul.f32 %v485, %v485
      %v494 = vmul.f32 %v487, %v487
      %v495 = vadd.f32 %v493, %v494
      %496 = vadd.xlane.f32.xlu0 %v495
      %v497 = vpop.xlane.xlu0 %496
      %498 = vst.msk [vmem:[%s206] sm:$0xff] %vm300, %v497
      %p499 = scmp.lt.s32.totalorder %s16, 1
      %s500 = scalar_select %p499, %s16, 1
      %s501 = smul.addr %s500, 8
      %s502 = scalar_lea.vmem %s3, %s501
      %p503 = scmp.lt.s32.totalorder %s16, 1
      %s504 = scalar_select %p503, %s16, 1
      %s505 = smul.addr %s504, 8
      %s506 = scalar_lea.vmem %s4, %s505
      // Predicated region
      $region33: #{resblock_forward.2} parent=31 // pred_check
        %p507 = pneg %p102
      $region34: #{resblock_forward.2} parent=31 // pred_check_branch
        %509 = sbr.rel (%p507) target = $region36
      $region35: #{resblock_forward.2} parent=31 // pred_region
        _
      $region36: #{resblock_forward.2} parent=31 // pred_fallthru
        _
      // Predicated region
      $region37: #{resblock_forward.2} parent=31 // pred_check
        %p510 = pneg %p128
      $region38: #{resblock_forward.2} parent=31 // pred_check_branch
        %512 = sbr.rel (%p510) target = $region40
      $region39: #{resblock_forward.2} parent=31 // pred_region
        _
      $region40: #{resblock_forward.2} parent=31 // pred_fallthru
        _
    $region32: #{resblock_forward.2} parent=5 // pred_fallthru
      _
    %p513 = scmp.le.s32.totalorder 2, %s11
    // Predicated region
    $region41: #{resblock_forward.2} parent=5 // pred_check
      %p514 = pneg %p513
    $region42: #{resblock_forward.2} parent=5 // pred_check_branch
      %516 = sbr.rel (%p514) target = $region44
    $region43: #{resblock_forward.2} parent=5 // pred_region
      %s517 = ssub.s32 %s11, 2
      // Predicated region
      $region45: #{resblock_forward.2} parent=43 // pred_check
        %p518 = pneg %p108
      $region46: #{resblock_forward.2} parent=43 // pred_check_branch
        %520 = sbr.rel (%p518) target = $region48
      $region47: #{resblock_forward.2} parent=43 // pred_region
        %p521 = scmp.lt.s32.totalorder %s17, 1
        %s522 = scalar_select %p521, %s17, 1
        %s523 = smul.addr %s522, 8
        %s524 = scalar_lea.vmem %s3, %s523
      $region48: #{resblock_forward.2} parent=43 // pred_fallthru
        _
      // Predicated region
      $region49: #{resblock_forward.2} parent=43 // pred_check
        %p525 = pneg %p134
      $region50: #{resblock_forward.2} parent=43 // pred_check_branch
        %527 = sbr.rel (%p525) target = $region52
      $region51: #{resblock_forward.2} parent=43 // pred_region
        %p528 = scmp.lt.s32.totalorder %s17, 1
        %s529 = scalar_select %p528, %s17, 1
        %s530 = smul.addr %s529, 8
        %s531 = scalar_lea.vmem %s4, %s530
      $region52: #{resblock_forward.2} parent=43 // pred_fallthru
        _
    $region44: #{resblock_forward.2} parent=5 // pred_fallthru
      _
  $region6: #{resblock_forward.2} parent=0 // loop_footer
    %s15 = sadd.s32 1, %s11
  $region7: #{resblock_forward.2} parent=0 // loop_footer_branch
    %10 = sbr.rel target = $region3
  $region8: #{resblock_forward.2} parent=0 // loop_exit
    _

// kernel: resblock_forward.3
$region0: #{resblock_forward.3}
  #allocation0 [shape = 'u32[]', space=smem, size = 0x4, offset = 0x4, fixed_abs, tag = 'smem constant byte address 0x4 - core index']
  #allocation1 [shape = 'u32[144,128]{1,0:T(1,128)}', space=vmem, size = 0x12000, scoped, tag = 'internal scratch']
  #allocation2 [shape = 'f32[4,512]{1,0:T(4,128)}', space=vmem, size = 0x2000, scoped, tag = 'scratch operand']
  #allocation3 [shape = 'f32[8,512]{1,0:T(8,128)}', space=vmem, size = 0x4000, scoped, tag = 'scratch operand']
  %s0 = inlined_call_operand.vmem [shape: f32[2,4,256], index: 0, kind: input, shape index: {}]
  %s1 = inlined_call_operand.vmem [shape: f32[8,1], index: 1, kind: input, shape index: {}]
  %s2 = inlined_call_operand.vmem [shape: f32[8,1], index: 2, kind: input, shape index: {}]
  %s3 = inlined_call_operand.vmem [shape: f32[8,36], index: 3, kind: input, shape index: {}]
  %s4 = inlined_call_operand.vmem [shape: f32[8,1], index: 4, kind: input, shape index: {}]
  %s5 = inlined_call_operand.vmem [shape: f32[4,72], index: 5, kind: input, shape index: {}]
  %s6 = inlined_call_operand.vmem [shape: f32[4,1], index: 6, kind: input, shape index: {}]
  %s7 = inlined_call_operand.vmem [shape: f32[2,4,256], index: 7, kind: output, shape index: {}]
  %s8 = sld [smem:[#allocation0]]
  $region61: #{resblock_forward.3} parent=0
    _
  %s10 = ssub.s32 1, %s8
  %s11 = scalar_select 0, %s10, %s8
  loop: start=0, step=1, limit=4
  $region2: #{resblock_forward.3} parent=0 // loop_pre_header
    _
  $region3: #{resblock_forward.3} parent=0 // loop_header
    %s13 = sphi 0, %s17
    %p14 = scmp.ge.s32.totalorder %s13, 4
    %s23 = sphi 0, %s25
    %s26 = sphi 0, %s23
    %s27 = sphi 0, %s26
    %s43 = sphi 0, %s27
    %s47 = sphi 0, %s47
    %s49 = sphi 0, %s47
    %s50 = sphi 0, %s49
    %s64 = sphi 0, %s50
    %s68 = sphi 0, %s68
    %s70 = sphi 0, %s68
    %s71 = sphi 0, %s70
    %s85 = sphi 0, %s71
    %s89 = sphi 0, %s89
    %s91 = sphi 0, %s89
    %s92 = sphi 0, %s91
    %s106 = sphi 0, %s92
    %s110 = sphi 0, %s110
    %s112 = sphi 0, %s110
    %s113 = sphi 0, %s112
    %s127 = sphi 0, %s113
    %s131 = sphi 0, %s131
    %s133 = sphi 0, %s131
    %s134 = sphi 0, %s133
    %s148 = sphi 0, %s134
    %s152 = sphi 0, %s152
    %s154 = sphi 0, %s152
    %s155 = sphi 0, %s154
    %s169 = sphi 0, %s155
    %s175 = sphi 0, %s177
    %s178 = sphi 0, %s175
    %s179 = sphi 0, %s178
    %s195 = sphi 0, %s179
  $region4: #{resblock_forward.3} parent=0 // loop_header_branch
    %16 = sbr.rel (%p14) target = $region8
  $region5: #{resblock_forward.3} parent=0 // loop_body
    %s18 = ssub.s32 %s13, 1
    %s19 = ssub.s32 %s13, 2
    %s20 = sadd.s32 %s13, 1
    %s21 = ssub.s32 %s13, %s20
    %p22 = scmp.eq.s32.totalorder %s21, 0
    %s24 = sadd.s32 %s23, 1
    %s25 = scalar_select %p22, %s23, %s24
    %p28 = pneg %p22
    %p29 = scmp.eq.s32.totalorder %s13, 1
    %p30 = por %p28, %p29
    %p31 = scmp.ne.s32.totalorder %s23, %s26
    %p32 = scmp.eq.s32.totalorder %s13, 0
    %p33 = por %p31, %p32
    %p34 = scmp.ne.s32.totalorder %s23, %s26
    %p35 = scmp.eq.s32.totalorder %s18, 1
    %p36 = por %p34, %p35
    %p37 = scmp.ne.s32.totalorder %s26, %s27
    %p38 = scmp.eq.s32.totalorder %s18, 0
    %p39 = por %p37, %p38
    %p40 = scmp.ne.s32.totalorder %s26, %s27
    %p41 = scmp.eq.s32.totalorder %s19, 1
    %p42 = por %p40, %p41
    %p44 = scmp.ne.s32.totalorder %s27, %s43
    %p45 = scmp.eq.s32.totalorder %s19, 0
    %p46 = por %p44, %p45
    %s48 = sadd.s32 %s47, 1
    %p51 = scmp.eq.s32.totalorder %s13, 1
    %p52 = scmp.ne.s32.totalorder %s47, %s49
    %p53 = scmp.eq.s32.totalorder %s13, 0
    %p54 = por %p52, %p53
    %p55 = scmp.ne.s32.totalorder %s47, %s49
    %p56 = scmp.eq.s32.totalorder %s18, 1
    %p57 = por %p55, %p56
    %p58 = scmp.ne.s32.totalorder %s49, %s50
    %p59 = scmp.eq.s32.totalorder %s18, 0
    %p60 = por %p58, %p59
    %p61 = scmp.ne.s32.totalorder %s49, %s50
    %p62 = scmp.eq.s32.totalorder %s19, 1
    %p63 = por %p61, %p62
    %p65 = scmp.ne.s32.totalorder %s50, %s64
    %p66 = scmp.eq.s32.totalorder %s19, 0
    %p67 = por %p65, %p66
    %s69 = sadd.s32 %s68, 1
    %p72 = scmp.eq.s32.totalorder %s13, 1
    %p73 = scmp.ne.s32.totalorder %s68, %s70
    %p74 = scmp.eq.s32.totalorder %s13, 0
    %p75 = por %p73, %p74
    %p76 = scmp.ne.s32.totalorder %s68, %s70
    %p77 = scmp.eq.s32.totalorder %s18, 1
    %p78 = por %p76, %p77
    %p79 = scmp.ne.s32.totalorder %s70, %s71
    %p80 = scmp.eq.s32.totalorder %s18, 0
    %p81 = por %p79, %p80
    %p82 = scmp.ne.s32.totalorder %s70, %s71
    %p83 = scmp.eq.s32.totalorder %s19, 1
    %p84 = por %p82, %p83
    %p86 = scmp.ne.s32.totalorder %s71, %s85
    %p87 = scmp.eq.s32.totalorder %s19, 0
    %p88 = por %p86, %p87
    %s90 = sadd.s32 %s89, 1
    %p93 = scmp.eq.s32.totalorder %s13, 1
    %p94 = scmp.ne.s32.totalorder %s89, %s91
    %p95 = scmp.eq.s32.totalorder %s13, 0
    %p96 = por %p94, %p95
    %p97 = scmp.ne.s32.totalorder %s89, %s91
    %p98 = scmp.eq.s32.totalorder %s18, 1
    %p99 = por %p97, %p98
    %p100 = scmp.ne.s32.totalorder %s91, %s92
    %p101 = scmp.eq.s32.totalorder %s18, 0
    %p102 = por %p100, %p101
    %p103 = scmp.ne.s32.totalorder %s91, %s92
    %p104 = scmp.eq.s32.totalorder %s19, 1
    %p105 = por %p103, %p104
    %p107 = scmp.ne.s32.totalorder %s92, %s106
    %p108 = scmp.eq.s32.totalorder %s19, 0
    %p109 = por %p107, %p108
    %s111 = sadd.s32 %s110, 1
    %p114 = scmp.eq.s32.totalorder %s13, 1
    %p115 = scmp.ne.s32.totalorder %s110, %s112
    %p116 = scmp.eq.s32.totalorder %s13, 0
    %p117 = por %p115, %p116
    %p118 = scmp.ne.s32.totalorder %s110, %s112
    %p119 = scmp.eq.s32.totalorder %s18, 1
    %p120 = por %p118, %p119
    %p121 = scmp.ne.s32.totalorder %s112, %s113
    %p122 = scmp.eq.s32.totalorder %s18, 0
    %p123 = por %p121, %p122
    %p124 = scmp.ne.s32.totalorder %s112, %s113
    %p125 = scmp.eq.s32.totalorder %s19, 1
    %p126 = por %p124, %p125
    %p128 = scmp.ne.s32.totalorder %s113, %s127
    %p129 = scmp.eq.s32.totalorder %s19, 0
    %p130 = por %p128, %p129
    %s132 = sadd.s32 %s131, 1
    %p135 = scmp.eq.s32.totalorder %s13, 1
    %p136 = scmp.ne.s32.totalorder %s131, %s133
    %p137 = scmp.eq.s32.totalorder %s13, 0
    %p138 = por %p136, %p137
    %p139 = scmp.ne.s32.totalorder %s131, %s133
    %p140 = scmp.eq.s32.totalorder %s18, 1
    %p141 = por %p139, %p140
    %p142 = scmp.ne.s32.totalorder %s133, %s134
    %p143 = scmp.eq.s32.totalorder %s18, 0
    %p144 = por %p142, %p143
    %p145 = scmp.ne.s32.totalorder %s133, %s134
    %p146 = scmp.eq.s32.totalorder %s19, 1
    %p147 = por %p145, %p146
    %p149 = scmp.ne.s32.totalorder %s134, %s148
    %p150 = scmp.eq.s32.totalorder %s19, 0
    %p151 = por %p149, %p150
    %s153 = sadd.s32 %s152, 1
    %p156 = scmp.eq.s32.totalorder %s13, 1
    %p157 = scmp.ne.s32.totalorder %s152, %s154
    %p158 = scmp.eq.s32.totalorder %s13, 0
    %p159 = por %p157, %p158
    %p160 = scmp.ne.s32.totalorder %s152, %s154
    %p161 = scmp.eq.s32.totalorder %s18, 1
    %p162 = por %p160, %p161
    %p163 = scmp.ne.s32.totalorder %s154, %s155
    %p164 = scmp.eq.s32.totalorder %s18, 0
    %p165 = por %p163, %p164
    %p166 = scmp.ne.s32.totalorder %s154, %s155
    %p167 = scmp.eq.s32.totalorder %s19, 1
    %p168 = por %p166, %p167
    %p170 = scmp.ne.s32.totalorder %s155, %s169
    %p171 = scmp.eq.s32.totalorder %s19, 0
    %p172 = por %p170, %p171
    %s173 = ssub.s32 %s13, %s20
    %p174 = scmp.eq.s32.totalorder %s173, 0
    %s176 = sadd.s32 %s175, 1
    %s177 = scalar_select %p174, %s175, %s176
    %p180 = pneg %p174
    %p181 = scmp.eq.s32.totalorder %s13, 1
    %p182 = por %p180, %p181
    %p183 = scmp.ne.s32.totalorder %s175, %s178
    %p184 = scmp.eq.s32.totalorder %s13, 0
    %p185 = por %p183, %p184
    %p186 = scmp.ne.s32.totalorder %s175, %s178
    %p187 = scmp.eq.s32.totalorder %s18, 1
    %p188 = por %p186, %p187
    %p189 = scmp.ne.s32.totalorder %s178, %s179
    %p190 = scmp.eq.s32.totalorder %s18, 0
    %p191 = por %p189, %p190
    %p192 = scmp.ne.s32.totalorder %s178, %s179
    %p193 = scmp.eq.s32.totalorder %s19, 1
    %p194 = por %p192, %p193
    %p196 = scmp.ne.s32.totalorder %s179, %s195
    %p197 = scmp.eq.s32.totalorder %s19, 0
    %p198 = por %p196, %p197
    %p199 = scmp.le.s32.totalorder 1, %s13
    %p200 = scmp.lt.s32.totalorder %s13, 3
    %p201 = pnand %p199, %p200
    %p202 = pneg %p201
    // Predicated region
    $region9: #{resblock_forward.3} parent=5 // pred_check
      _
    $region10: #{resblock_forward.3} parent=5 // pred_check_branch
      %204 = sbr.rel (%p201) target = $region12
    $region11: #{resblock_forward.3} parent=5 // pred_region
      %s205 = ssub.s32 %s13, 1
      // Predicated region
      $region13: #{resblock_forward.3} parent=11 // pred_check
        %p206 = pneg %p60
      $region14: #{resblock_forward.3} parent=11 // pred_check_branch
        %208 = sbr.rel (%p206) target = $region16
      $region15: #{resblock_forward.3} parent=11 // pred_region
        _
      $region16: #{resblock_forward.3} parent=11 // pred_fallthru
        _
      // Predicated region
      $region17: #{resblock_forward.3} parent=11 // pred_check
        %p209 = pneg %p81
      $region18: #{resblock_forward.3} parent=11 // pred_check_branch
        %211 = sbr.rel (%p209) target = $region20
      $region19: #{resblock_forward.3} parent=11 // pred_region
        _
      $region20: #{resblock_forward.3} parent=11 // pred_fallthru
        _
      // Predicated region
      $region21: #{resblock_forward.3} parent=11 // pred_check
        %p212 = pneg %p102
      $region22: #{resblock_forward.3} parent=11 // pred_check_branch
        %214 = sbr.rel (%p212) target = $region24
      $region23: #{resblock_forward.3} parent=11 // pred_region
        _
      $region24: #{resblock_forward.3} parent=11 // pred_fallthru
        _
      // Predicated region
      $region25: #{resblock_forward.3} parent=11 // pred_check
        %p215 = pneg %p123
      $region26: #{resblock_forward.3} parent=11 // pred_check_branch
        %217 = sbr.rel (%p215) target = $region28
      $region27: #{resblock_forward.3} parent=11 // pred_region
        _
      $region28: #{resblock_forward.3} parent=11 // pred_fallthru
        _
      // Predicated region
      $region29: #{resblock_forward.3} parent=11 // pred_check
        %p218 = pneg %p144
      $region30: #{resblock_forward.3} parent=11 // pred_check_branch
        %220 = sbr.rel (%p218) target = $region32
      $region31: #{resblock_forward.3} parent=11 // pred_region
        _
      $region32: #{resblock_forward.3} parent=11 // pred_fallthru
        _
      // Predicated region
      $region33: #{resblock_forward.3} parent=11 // pred_check
        %p221 = pneg %p165
      $region34: #{resblock_forward.3} parent=11 // pred_check_branch
        %223 = sbr.rel (%p221) target = $region36
      $region35: #{resblock_forward.3} parent=11 // pred_region
        _
      $region36: #{resblock_forward.3} parent=11 // pred_fallthru
        _
    $region12: #{resblock_forward.3} parent=5 // pred_fallthru
      _
    %p224 = scmp.lt.s32.totalorder %s13, 2
    // Predicated region
    $region37: #{resblock_forward.3} parent=5 // pred_check
      %p225 = pneg %p224
    $region38: #{resblock_forward.3} parent=5 // pred_check_branch
      %227 = sbr.rel (%p225) target = $region40
    $region39: #{resblock_forward.3} parent=5 // pred_region
      // Predicated region
      $region41: #{resblock_forward.3} parent=39 // pred_check
        %p228 = pneg %p33
      $region42: #{resblock_forward.3} parent=39 // pred_check_branch
        %230 = sbr.rel (%p228) target = $region44
      $region43: #{resblock_forward.3} parent=39 // pred_region
        %p231 = scmp.lt.s32.totalorder %s13, 1
        %s232 = scalar_select %p231, %s13, 1
        %s233 = smul.addr %s232, 2
        %s234 = smul.addr %s233, 4
        %s235 = scalar_lea.vmem %s0, %s234
      $region44: #{resblock_forward.3} parent=39 // pred_fallthru
        _
    $region40: #{resblock_forward.3} parent=5 // pred_fallthru
      _
    %p236 = scmp.le.s32.totalorder 1, %s13
    %p237 = scmp.lt.s32.totalorder %s13, 3
    %p238 = pnand %p236, %p237
    %p239 = pneg %p238
    // Predicated region
    $region45: #{resblock_forward.3} parent=5 // pred_check
      _
    $region46: #{resblock_forward.3} parent=5 // pred_check_branch
      %241 = sbr.rel (%p238) target = $region48
    $region47: #{resblock_forward.3} parent=5 // pred_region
      %s242 = ssub.s32 %s13, 1
      %p243 = scmp.lt.s32.totalorder %s18, 1
      %s244 = scalar_select %p243, %s18, 1
      %s245 = smul.addr %s244, 2
      %s246 = smul.addr %s245, 4
      %s247 = scalar_lea.vmem %s0, %s246
      %p248 = pneg %p39
      %p249 = pneg %p36
      %p250 = pneg %p60
      %p251 = pneg %p57
      %p252 = pneg %p81
      %p253 = pneg %p78
      %p254 = pneg %p102
      %p255 = pneg %p99
      %p256 = pneg %p123
      %p257 = pneg %p120
      %p258 = pneg %p144
      %p259 = pneg %p141
      %p260 = pneg %p165
      %p261 = pneg %p162
      %p262 = pneg %p191
      %p263 = pneg %p188
      %p264 = scmp.lt.s32.totalorder %s18, 1
      %s265 = scalar_select %p264, %s18, 1
      %s266 = smul.addr %s265, 2
      %s267 = smul.addr %s266, 4
      %s268 = scalar_lea.vmem %s7, %s267
      %p269 = scmp.lt.s32.totalorder %s18, 1
      %s270 = scalar_select %p269, %s18, 1
      %s271 = smul.addr %s270, 2
      %s272 = smul.addr %s271, 4
      %s273 = scalar_lea.vmem %s0, %s272
      %p274 = scmp.lt.s32.totalorder %s18, 1
      %s275 = scalar_select %p274, %s18, 1
      %s276 = smul.addr %s275, 2
      %s277 = smul.addr %s276, 4
      %s278 = scalar_lea.vmem %s7, %s277
      %v279 = vlaneseq
      %v280 = vand.u32 %v279, 127
      %v281 = vadd.s32 %v280, 128
      %vm282 = vcmp.lt.s32.totalorder %v280, 0
      %v283 = vsub.s32 0, %v280
      %v284 = vsel %vm282, %v283, %v280
      %v285 = vshrl.u32 %v284, 4
      %v286 = vand.u32 %v284, 15
      %v287 = vsub.s32 0, %v286
      %v288 = vsel %vm282, %v287, %v286
      %vm289 = vcmp.lt.s32.totalorder %v281, 0
      %v290 = vsub.s32 0, %v281
      %v291 = vsel %vm289, %v290, %v281
      %v292 = vshrl.u32 %v291, 4
      %v293 = vand.u32 %v291, 15
      %v294 = vsub.s32 0, %v293
      %v295 = vsel %vm289, %v294, %v293
      %vm296 = vcmp.ne.s32.totalorder %v288, 0
      %vm297 = vcmp.ne.s32.totalorder %v295, 0
      %vm298 = vcmp.lt.s32.totalorder %v288, 0
      %vm299 = vcmp.lt.s32.totalorder %v295, 0
      %vm300 = vmand %vm298, %vm296
      %vm301 = vmand %vm299, %vm297
      %v302 = vadd.s32 %v288, 16
      %v303 = vadd.s32 %v295, 16
      %v304 = vsel %vm300, %v302, %v288
      %v305 = vsel %vm301, %v303, %v295
      %v306 = vadd.s32 %v304, 4294967295
      %v307 = vadd.s32 %v305, 4294967295
      %vm308 = vcmp.ge.s32.totalorder %v306, 0
      %vm309 = vcmp.ge.s32.totalorder %v307, 0
      %vm310 = vcmp.lt.s32.totalorder %v306, 16
      %vm311 = vcmp.lt.s32.totalorder %v307, 16
      %vm312 = vmand %vm308, %vm310
      %vm313 = vmand %vm309, %vm311
      %v314 = vadd.s32 %v304, 1
      %v315 = vadd.s32 %v305, 1
      %vm316 = vcmp.ge.s32.totalorder %v314, 0
      %vm317 = vcmp.ge.s32.totalorder %v315, 0
      %vm318 = vcmp.lt.s32.totalorder %v314, 16
      %vm319 = vcmp.lt.s32.totalorder %v315, 16
      %vm320 = vmand %vm316, %vm318
      %vm321 = vmand %vm317, %vm319
      %v322 = vld [vmem:[%s273] sm:$0xff]
      %323 = vst [vmem:[#allocation2] sm:$0xf] 0.0
      %324 = vst [vmem:[#allocation2 + $0xc] sm:$0xf] 0.0
      %325 = vst [vmem:[#allocation2 + $0x4] sm:$0xff] %v322
      %v326 = vld [vmem:[%s3] sm:$0xff]
      %v327 = vld [vmem:[#allocation2] sm:$0xff]
      %v328 = vld [vmem:[#allocation2 + $0x8] sm:$0xf]
      %v329 = vsel %vm312, 1, 0
      %v330 = vsel %vm313, 1, 0
      %vm331 = vcmp.eq.s32.totalorder %v329, 1
      %vm332 = vcmp.eq.s32.totalorder %v330, 1
      %v335 = vcombine.high %v327, %v327
      %336 = vrot.lane.b32.xlu0 %v327, 17
      %v337 = vpop.permute.xlu0 %336
      %338 = vrot.lane.b32.xlu0 %v335, 17
      %v339 = vpop.permute.xlu0 %338
      %340 = vrot.lane.b32.xlu0 %v328, 17
      %v341 = vpop.permute.xlu0 %340
      %vm342 = vcmask 138240
      %v343 = vsel %vm342, %v337, %v339
      %v344 = vsel %vm342, %v339, %v341
      %v347 = vsel %vm331, %v343, 0.0
      %v348 = vsel %vm332, %v344, 0.0
      %v349 = vsel %vm320, 1, 0
      %v350 = vsel %vm321, 1, 0
      %vm351 = vcmp.eq.s32.totalorder %v349, 1
      %vm352 = vcmp.eq.s32.totalorder %v350, 1
      %353 = vrot.lane.b32.xlu0 %v327, 15
      %v354 = vpop.permute.xlu0 %353
      %355 = vrot.lane.b32.xlu0 %v335, 15
      %v356 = vpop.permute.xlu0 %355
      %357 = vrot.lane.b32.xlu0 %v328, 15
      %v358 = vpop.permute.xlu0 %357
      %vm359 = vcmask 121856
      %v360 = vsel %vm359, %v354, %v356
      %v361 = vsel %vm359, %v356, %v358
      %v364 = vsel %vm351, %v360, 0.0
      %v365 = vsel %vm352, %v361, 0.0
      %366 = vrot.lane.b32.xlu0 %v327, 1
      %v367 = vpop.permute.xlu0 %366
      %368 = vrot.lane.b32.xlu0 %v335, 1
      %v369 = vpop.permute.xlu0 %368
      %370 = vrot.lane.b32.xlu0 %v328, 1
      %v371 = vpop.permute.xlu0 %370
      %vm372 = vcmask 7168
      %v373 = vsel %vm372, %v367, %v369
      %v374 = vsel %vm372, %v369, %v371
      %v377 = vsel %vm331, %v373, 0.0
      %v378 = vsel %vm332, %v374, 0.0
      %v379 = vld [vmem:[#allocation2 + $0x4] sm:$0xff]
      %v380 = vld [vmem:[#allocation2 + $0x4] sm:$0xff]
      %v381 = vld [vmem:[#allocation2 + $0xc] sm:$0xf]
      %v384 = vcombine.high %v380, %v380
      %385 = vrot.lane.b32.xlu0 %v380, 127
      %v386 = vpop.permute.xlu0 %385
      %387 = vrot.lane.b32.xlu0 %v384, 127
      %v388 = vpop.permute.xlu0 %387
      %389 = vrot.lane.b32.xlu0 %v381, 127
      %v390 = vpop.permute.xlu0 %389
      %vm391 = vcmask 1039360
      %v392 = vsel %vm391, %v386, %v388
      %v393 = vsel %vm391, %v388, %v390
      %v396 = vsel %vm351, %v392, 0.0
      %v397 = vsel %vm352, %v393, 0.0
      %398 = vrot.lane.b32.xlu0 %v380, 113
      %v399 = vpop.permute.xlu0 %398
      %400 = vrot.lane.b32.xlu0 %v384, 113
      %v401 = vpop.permute.xlu0 %400
      %402 = vrot.lane.b32.xlu0 %v381, 113
      %v403 = vpop.permute.xlu0 %402
      %vm404 = vcmask 924672
      %v405 = vsel %vm404, %v399, %v401
      %v406 = vsel %vm404, %v401, %v403
      %v409 = vsel %vm331, %v405, 0.0
      %v410 = vsel %vm332, %v406, 0.0
      %411 = vrot.lane.b32.xlu0 %v380, 111
      %v412 = vpop.permute.xlu0 %411
      %413 = vrot.lane.b32.xlu0 %v384, 111
      %v414 = vpop.permute.xlu0 %413
      %415 = vrot.lane.b32.xlu0 %v381, 111
      %v416 = vpop.permute.xlu0 %415
      %vm417 = vcmask 908288
      %v418 = vsel %vm417, %v412, %v414
      %v419 = vsel %vm417, %v414, %v416
      %v422 = vsel %vm351, %v418, 0.0
      %v423 = vsel %vm352, %v419, 0.0
      %v424 = vcombine.low %v327, %v327
      %v425 = vcombine.low %v328, %v328
      %426 = vrot.lane.b32.xlu0 %v424, 16
      %v427 = vpop.permute.xlu0 %426
      %428 = vrot.lane.b32.xlu0 %v327, 16
      %v429 = vpop.permute.xlu0 %428
      %430 = vrot.lane.b32.xlu0 %v425, 16
      %v431 = vpop.permute.xlu0 %430
      %vm432 = vcmask 130048
      %v433 = vsel %vm432, %v427, %v429
      %v434 = vsel %vm432, %v429, %v431
      %v439 = vrot.slane %v377, 4
      %v440 = vrot.slane %v378, 4
      %v444 = vcombine.high %v379, %v379
      %v448 = vrot.slane %v396, 4
      %v449 = vrot.slane %v397, 4
      %v452 = vcombine.low %v380, %v380
      %v453 = vcombine.low %v381, %v381
      %454 = vrot.lane.b32.xlu0 %v452, 112
      %v455 = vpop.permute.xlu0 %454
      %456 = vrot.lane.b32.xlu0 %v380, 112
      %v457 = vpop.permute.xlu0 %456
      %458 = vrot.lane.b32.xlu0 %v453, 112
      %v459 = vpop.permute.xlu0 %458
      %vm460 = vcmask 916480
      %v461 = vsel %vm460, %v455, %v457
      %v462 = vsel %vm460, %v457, %v459
      %vm465 = vcmask 1043456
      %v466 = vsel %vm465, %v347, %v433
      %v467 = vsel %vm465, %v348, %v434
      %v468 = vsel %vm465, %v364, %v439
      %v469 = vsel %vm465, %v365, %v440
      %v470 = vsel %vm465, %v379, %v448
      %v471 = vsel %vm465, %v444, %v449
      %v472 = vsel %vm465, %v409, %v461
      %v473 = vsel %vm465, %v410, %v462
      %v474 = vld [vmem:[%s4] sm:$0xff]
      %476 = vset.pattern.permute.xlu0 0
      %477 = vperm.xlu0 %476, %v474
      %v478 = vpop.permute.xlu0 %477
      %vm480 = vcmask 293888
      %v482 = vsel %vm480, %v326, 0
      %v485 = vsel %vm465, %v422, 0
      %v488 = vsel %vm465, %v423, 0
      %490 = vmatprep.subr.mxu0 %v467
      %491 = vmatpush1.msra.mxu0 %v466
      %492 = vmatprep.subr.mxu0 %v469
      %493 = vmatpush1.msra.mxu0 %v468
      %494 = vmatprep.subr.mxu0 %v471
      %495 = vmatpush1.msra.mxu0 %v470
      %496 = vmatprep.subr.mxu0 %v473
      %497 = vmatpush1.msra.mxu0 %v472
      %498 = vmatprep.subr.mxu0 %v488
      %499 = vmatpush1.msra.mxu0 %v485
      %500 = vmatprep.subr.mxu0 0.0
      %501 = vmatpush1.msra.mxu0 0.0
      %502 = vmatprep.subr.mxu0 0.0
      %503 = vmatpush1.msra.mxu0 0.0
      %504 = vmatprep.subr.mxu0 0.0
      %505 = vmatpush1.msra.mxu0 0.0
      %506 = vmatprep.subr.mxu0 0.0
      %507 = vmatpush1.msra.mxu0 0.0
      %508 = vmatprep.subr.mxu0 0.0
      %509 = vmatpush1.msra.mxu0 0.0
      %510 = vmatprep.subr.mxu0 0.0
      %511 = vmatpush1.msra.mxu0 0.0
      %512 = vmatprep.subr.mxu0 0.0
      %513 = vmatpush1.msra.mxu0 0.0
      %514 = vmatprep.subr.mxu0 0.0
      %515 = vmatpush1.msra.mxu0 0.0
      %516 = vmatprep.subr.mxu0 0.0
      %517 = vmatpush1.msra.mxu0 0.0
      %518 = vmatprep.subr.mxu0 0.0
      %519 = vmatpush1.msra.mxu0 0.0
      %520 = vmatprep.subr.mxu0 0.0
      %521 = vmatpush1.msra.mxu0 0.0
      %522 = vmatprep.subr.mxu0 0.0
      %523 = vmatpush1.msra.mxu0 0.0
      %524 = vmatprep.subr.mxu0 0.0
      %525 = vmatpush1.msra.mxu0 0.0
      %526 = vmatprep.subr.mxu0 0.0
      %527 = vmatpush1.msra.mxu0 0.0
      %528 = vmatprep.subr.mxu0 0.0
      %529 = vmatpush1.msra.mxu0 0.0
      %530 = vmatprep.subr.mxu0 0.0
      %531 = vmatpush1.msra.mxu0 0.0
      %532 = vmatprep.subr.mxu0 0.0
      %533 = vmatpush1.msra.mxu0 0.0
      %534 = vmatprep.subr.mxu0 0.0
      %535 = vmatpush1.msra.mxu0 0.0
      %536 = vmatprep.subr.mxu0 0.0
      %537 = vmatpush1.msra.mxu0 0.0
      %538 = vmatprep.subr.mxu0 0.0
      %539 = vmatpush1.msra.mxu0 0.0
      %540 = vmatprep.subr.mxu0 0.0
      %541 = vmatpush1.msra.mxu0 0.0
      %542 = vmatprep.subr.mxu0 0.0
      %543 = vmatpush1.msra.mxu0 0.0
      %544 = vmatprep.subr.mxu0 0.0
      %545 = vmatpush1.msra.mxu0 0.0
      %546 = vmatprep.subr.mxu0 0.0
      %547 = vmatpush1.msra.mxu0 0.0
      %548 = vmatprep.subr.mxu0 0.0
      %549 = vmatpush1.msra.mxu0 0.0
      %550 = vmatprep.subr.mxu0 0.0
      %551 = vmatpush1.msra.mxu0 0.0
      %552 = vmatprep.subr.mxu0 0.0
      %553 = vmatpush1.msra.mxu0 0.0
      %554 = vmatprep.mubr.f32.mxu0 0.0
      %555 = vmatmul.mubr.f32.gmra.mrb[0].mxu0 %v482
      %v556 = vpop.f32.mrb[0].mxu0
      %v557 = vadd.f32 %v478, %v556
      %v558 = vpop.f32.mrb[0].mxu0
      %v559 = vadd.f32 %v478, %v558
      %560 = vdwg.mxu0
      %v561 = vld [vmem:[%s1] sm:$0xff]
      %563 = vset.pattern.permute.xlu0 0
      %564 = vperm.xlu0 %563, %v561
      %v565 = vpop.permute.xlu0 %564
      %v567 = vmul.f32 %v557, %v565
      %v568 = vmul.f32 %v559, %v565
      %v569 = vld [vmem:[%s2] sm:$0xff]
      %571 = vset.pattern.permute.xlu0 0
      %572 = vperm.xlu0 %571, %v569
      %v573 = vpop.permute.xlu0 %572
      %v575 = vadd.f32 %v567, %v573
      %v576 = vadd.f32 %v568, %v573
      %v577 = vmax.f32 %v575, 0.0
      %v578 = vmax.f32 %v576, 0.0
      %579 = vst [vmem:[#allocation3] sm:$0xff] 0.0
      %580 = vst [vmem:[#allocation3 + $0x18] sm:$0xff] 0.0
      %581 = vst [vmem:[#allocation3 + $0x8] sm:$0xff] %v577
      %582 = vst [vmem:[#allocation3 + $0x10] sm:$0xff] %v578
      %v583 = vld [vmem:[%s5] sm:$0xf]
      %v584 = vld [vmem:[#allocation3] sm:$0xff]
      %v585 = vld [vmem:[#allocation3 + $0x8] sm:$0xff]
      %v586 = vld [vmem:[#allocation3 + $0x10] sm:$0xff]
      %590 = vrot.lane.b32.xlu0 %v584, 17
      %v591 = vpop.permute.xlu0 %590
      %592 = vrot.lane.b32.xlu0 %v585, 17
      %v593 = vpop.permute.xlu0 %592
      %594 = vrot.lane.b32.xlu0 %v586, 17
      %v595 = vpop.permute.xlu0 %594
      %v596 = vsel %vm342, %v591, %v593
      %v597 = vsel %vm342, %v593, %v595
      %v600 = vsel %vm331, %v596, 0.0
      %v601 = vsel %vm332, %v597, 0.0
      %602 = vrot.lane.b32.xlu0 %v584, 15
      %v603 = vpop.permute.xlu0 %602
      %604 = vrot.lane.b32.xlu0 %v585, 15
      %v605 = vpop.permute.xlu0 %604
      %606 = vrot.lane.b32.xlu0 %v586, 15
      %v607 = vpop.permute.xlu0 %606
      %v608 = vsel %vm359, %v603, %v605
      %v609 = vsel %vm359, %v605, %v607
      %v612 = vsel %vm351, %v608, 0.0
      %v613 = vsel %vm352, %v609, 0.0
      %614 = vrot.lane.b32.xlu0 %v584, 1
      %v615 = vpop.permute.xlu0 %614
      %616 = vrot.lane.b32.xlu0 %v585, 1
      %v617 = vpop.permute.xlu0 %616
      %618 = vrot.lane.b32.xlu0 %v586, 1
      %v619 = vpop.permute.xlu0 %618
      %v620 = vsel %vm372, %v615, %v617
      %v621 = vsel %vm372, %v617, %v619
      %v624 = vsel %vm331, %v620, 0.0
      %v625 = vsel %vm332, %v621, 0.0
      %v626 = vld [vmem:[#allocation3 + $0x8] sm:$0xff]
      %v627 = vld [vmem:[#allocation3 + $0x10] sm:$0xff]
      %v628 = vld [vmem:[#allocation3 + $0x18] sm:$0xff]
      %632 = vrot.lane.b32.xlu0 %v626, 127
      %v633 = vpop.permute.xlu0 %632
      %634 = vrot.lane.b32.xlu0 %v627, 127
      %v635 = vpop.permute.xlu0 %634
      %636 = vrot.lane.b32.xlu0 %v628, 127
      %v637 = vpop.permute.xlu0 %636
      %v638 = vsel %vm391, %v633, %v635
      %v639 = vsel %vm391, %v635, %v637
      %v642 = vsel %vm351, %v638, 0.0
      %v643 = vsel %vm352, %v639, 0.0
      %644 = vrot.lane.b32.xlu0 %v626, 113
      %v645 = vpop.permute.xlu0 %644
      %646 = vrot.lane.b32.xlu0 %v627, 113
      %v647 = vpop.permute.xlu0 %646
      %648 = vrot.lane.b32.xlu0 %v628, 113
      %v649 = vpop.permute.xlu0 %648
      %v650 = vsel %vm404, %v645, %v647
      %v651 = vsel %vm404, %v647, %v649
      %v654 = vsel %vm331, %v650, 0.0
      %v655 = vsel %vm332, %v651, 0.0
      %656 = vrot.lane.b32.xlu0 %v626, 111
      %v657 = vpop.permute.xlu0 %656
      %658 = vrot.lane.b32.xlu0 %v627, 111
      %v659 = vpop.permute.xlu0 %658
      %660 = vrot.lane.b32.xlu0 %v628, 111
      %v661 = vpop.permute.xlu0 %660
      %v662 = vsel %vm417, %v657, %v659
      %v663 = vsel %vm417, %v659, %v661
      %v666 = vsel %vm351, %v662, 0.0
      %v667 = vsel %vm352, %v663, 0.0
      %668 = vrot.lane.b32.xlu0 %v584, 16
      %v669 = vpop.permute.xlu0 %668
      %670 = vrot.lane.b32.xlu0 %v585, 16
      %v671 = vpop.permute.xlu0 %670
      %672 = vrot.lane.b32.xlu0 %v586, 16
      %v673 = vpop.permute.xlu0 %672
      %v674 = vsel %vm432, %v669, %v671
      %v675 = vsel %vm432, %v671, %v673
      %678 = vrot.lane.b32.xlu0 %v626, 112
      %v679 = vpop.permute.xlu0 %678
      %680 = vrot.lane.b32.xlu0 %v627, 112
      %v681 = vpop.permute.xlu0 %680
      %682 = vrot.lane.b32.xlu0 %v628, 112
      %v683 = vpop.permute.xlu0 %682
      %v684 = vsel %vm460, %v679, %v681
      %v685 = vsel %vm460, %v681, %v683
      %v688 = vld [vmem:[%s6] sm:$0xf]
      %690 = vset.pattern.permute.xlu0 0
      %691 = vperm.xlu0 %690, %v688
      %v692 = vpop.permute.xlu0 %691
      %vm694 = vcmask 588800
      %v696 = vsel %vm694, %v583, 0
      %698 = vmatprep.subr.mxu0 %v601
      %699 = vmatpush1.msra.mxu0 %v600
      %700 = vmatprep.subr.mxu0 %v675
      %701 = vmatpush1.msra.mxu0 %v674
      %702 = vmatprep.subr.mxu0 %v613
      %703 = vmatpush1.msra.mxu0 %v612
      %704 = vmatprep.subr.mxu0 %v625
      %705 = vmatpush1.msra.mxu0 %v624
      %706 = vmatprep.subr.mxu0 %v586
      %707 = vmatpush1.msra.mxu0 %v585
      %708 = vmatprep.subr.mxu0 %v643
      %709 = vmatpush1.msra.mxu0 %v642
      %710 = vmatprep.subr.mxu0 %v655
      %711 = vmatpush1.msra.mxu0 %v654
      %712 = vmatprep.subr.mxu0 %v685
      %713 = vmatpush1.msra.mxu0 %v684
      %714 = vmatprep.subr.mxu0 %v667
      %715 = vmatpush1.msra.mxu0 %v666
      %716 = vmatprep.subr.mxu0 0.0
      %717 = vmatpush1.msra.mxu0 0.0
      %718 = vmatprep.subr.mxu0 0.0
      %719 = vmatpush1.msra.mxu0 0.0
      %720 = vmatprep.subr.mxu0 0.0
      %721 = vmatpush1.msra.mxu0 0.0
      %722 = vmatprep.subr.mxu0 0.0
      %723 = vmatpush1.msra.mxu0 0.0
      %724 = vmatprep.subr.mxu0 0.0
      %725 = vmatpush1.msra.mxu0 0.0
      %726 = vmatprep.subr.mxu0 0.0
      %727 = vmatpush1.msra.mxu0 0.0
      %728 = vmatprep.subr.mxu0 0.0
      %729 = vmatpush1.msra.mxu0 0.0
      %730 = vmatprep.subr.mxu0 0.0
      %731 = vmatpush1.msra.mxu0 0.0
      %732 = vmatprep.subr.mxu0 0.0
      %733 = vmatpush1.msra.mxu0 0.0
      %734 = vmatprep.subr.mxu0 0.0
      %735 = vmatpush1.msra.mxu0 0.0
      %736 = vmatprep.subr.mxu0 0.0
      %737 = vmatpush1.msra.mxu0 0.0
      %738 = vmatprep.subr.mxu0 0.0
      %739 = vmatpush1.msra.mxu0 0.0
      %740 = vmatprep.subr.mxu0 0.0
      %741 = vmatpush1.msra.mxu0 0.0
      %742 = vmatprep.subr.mxu0 0.0
      %743 = vmatpush1.msra.mxu0 0.0
      %744 = vmatprep.subr.mxu0 0.0
      %745 = vmatpush1.msra.mxu0 0.0
      %746 = vmatprep.subr.mxu0 0.0
      %747 = vmatpush1.msra.mxu0 0.0
      %748 = vmatprep.subr.mxu0 0.0
      %749 = vmatpush1.msra.mxu0 0.0
      %750 = vmatprep.subr.mxu0 0.0
      %751 = vmatpush1.msra.mxu0 0.0
      %752 = vmatprep.subr.mxu0 0.0
      %753 = vmatpush1.msra.mxu0 0.0
      %754 = vmatprep.subr.mxu0 0.0
      %755 = vmatpush1.msra.mxu0 0.0
      %756 = vmatprep.subr.mxu0 0.0
      %757 = vmatpush1.msra.mxu0 0.0
      %758 = vmatprep.subr.mxu0 0.0
      %759 = vmatpush1.msra.mxu0 0.0
      %760 = vmatprep.subr.mxu0 0.0
      %761 = vmatpush1.msra.mxu0 0.0
      %762 = vmatprep.mubr.f32.mxu0 0.0
      %763 = vmatmul.mubr.f32.gmra.mrb[0].mxu0 %v696
      %v764 = vpop.f32.mrb[0].mxu0
      %v765 = vadd.f32 %v692, %v764
      %v766 = vpop.f32.mrb[0].mxu0
      %v767 = vadd.f32 %v692, %v766
      %768 = vdwg.mxu0
      %v769 = vld [vmem:[%s273] sm:$0xff]
      %v772 = vcombine.low %v765, %v767
      %v774 = vadd.f32 %v769, %v772
      %775 = vst [vmem:[%s278] sm:$0xff] %v774
      %p776 = scmp.lt.s32.totalorder %s18, 1
      %s777 = scalar_select %p776, %s18, 1
      %s778 = smul.addr %s777, 2
      %s779 = smul.addr %s778, 4
      %s780 = scalar_lea.vmem %s7, %s779
      // Predicated region
      $region49: #{resblock_forward.3} parent=47 // pred_check
        %p781 = pneg %p188
      $region50: #{resblock_forward.3} parent=47 // pred_check_branch
        %783 = sbr.rel (%p781) target = $region52
      $region51: #{resblock_forward.3} parent=47 // pred_region
        _
      $region52: #{resblock_forward.3} parent=47 // pred_fallthru
        _
    $region48: #{resblock_forward.3} parent=5 // pred_fallthru
      _
    %p784 = scmp.le.s32.totalorder 2, %s13
    // Predicated region
    $region53: #{resblock_forward.3} parent=5 // pred_check
      %p785 = pneg %p784
    $region54: #{resblock_forward.3} parent=5 // pred_check_branch
      %787 = sbr.rel (%p785) target = $region56
    $region55: #{resblock_forward.3} parent=5 // pred_region
      %s788 = ssub.s32 %s13, 2
      // Predicated region
      $region57: #{resblock_forward.3} parent=55 // pred_check
        %p789 = pneg %p194
      $region58: #{resblock_forward.3} parent=55 // pred_check_branch
        %791 = sbr.rel (%p789) target = $region60
      $region59: #{resblock_forward.3} parent=55 // pred_region
        %p792 = scmp.lt.s32.totalorder %s19, 1
        %s793 = scalar_select %p792, %s19, 1
        %s794 = smul.addr %s793, 2
        %s795 = smul.addr %s794, 4
        %s796 = scalar_lea.vmem %s7, %s795
      $region60: #{resblock_forward.3} parent=55 // pred_fallthru
        _
    $region56: #{resblock_forward.3} parent=5 // pred_fallthru
      _
  $region6: #{resblock_forward.3} parent=0 // loop_footer
    %s17 = sadd.s32 1, %s13
  $region7: #{resblock_forward.3} parent=0 // loop_footer_branch
    %12 = sbr.rel target = $region3
  $region8: #{resblock_forward.3} parent=0 // loop_exit
    _

</llo_original>
